<compile_context>
chip_gen: v7x
topology: tpu7x:2x2x1
jax: 0.10.0
libtpu: 0.0.40
codegen_flags: <defaults>
</compile_context>

<pallas_src>
import functools
import math

import jax
import jax.numpy as jnp
from jax import lax
from jax.experimental import pallas as pl
from jax.experimental.pallas import tpu as pltpu

EPS = 1e-5          # nn.GroupNorm default eps
LANE = 128
SUBLANE = 8


# --------------------------------------------------------------------------- #
# helpers
# --------------------------------------------------------------------------- #
def _gelu_exact(x):
    # PyTorch nn.GELU() default: exact erf formulation.
    return 0.5 * x * (1.0 + lax.erf(x * (1.0 / math.sqrt(2.0))))


def _round_up(n, m):
    return (n + m - 1) // m * m


def _pad_axis(a, axis, size):
    if a.shape[axis] == size:
        return a
    widths = [(0, 0)] * a.ndim
    widths[axis] = (0, size - a.shape[axis])
    return jnp.pad(a, widths)


def _vmem_limit_bytes():
    """Scoped-VMEM limit derived from this generation's physical capacity
    (128 MiB on v5e/v6e, 64 MiB per core on v7x) with ~25% headroom for
    Mosaic-internal scratch."""
    try:
        cap = int(pltpu.get_tpu_info().vmem_capacity_bytes)
    except Exception:
        cap = 64 * 1024 * 1024          # conservative fallback (v7x per-core)
    return min(cap * 3 // 4, 100 * 1024 * 1024)


def _pick_block(total, max_block):
    """Largest divisor of `total` <= max_block, preferring an even number of
    grid steps (balances v7x's two TensorCores), then >= 2 steps, then any."""
    max_block = max(1, min(total, max_block))
    divs = [c for c in range(1, max_block + 1) if total % c == 0]
    even = [c for c in divs if (total // c) % 2 == 0]
    multi = [c for c in divs if total // c >= 2]
    for cands in (even, multi, divs):
        if cands:
            return max(cands)
    return 1


def _pick_e_chunk(ep, dp, witem, budget):
    """Largest multiple-of-128 divisor of Ep whose streamed (double-buffered)
    w1t/w2t chunks fit in `budget` bytes."""
    per_col = 2 * 2 * dp * witem        # w1t + w2t columns, 2 pipeline buffers
    best = LANE
    c = LANE
    while c <= ep:
        if ep % c == 0 and c * per_col <= budget:
            best = c
        c += LANE
    return best


def _col_vmem_bytes(n, n_buf):
    # an (n, 1) f32 block occupies ceil(n/8)*8 sublanes x 128 lanes per buffer
    return _round_up(n, SUBLANE) * LANE * 4 * n_buf


def _resident_spec(shape, single_buffer):
    """Constant-index (resident) block; single-buffered when supported so the
    weights/biases sit in VMEM once instead of twice."""
    ndim = len(shape)
    idx = lambda *_: (0,) * ndim
    if single_buffer and hasattr(pl, "Buffered"):
        return pl.BlockSpec(shape, idx, pipeline_mode=pl.Buffered(1))
    return pl.BlockSpec(shape, idx)


# --------------------------------------------------------------------------- #
# kernels
# --------------------------------------------------------------------------- #
def _mlp_channel_kernel(d_true, x_ref, g_ref, b_ref, w1t_ref, b1_ref,
                        w2t_ref, b2_ref, o_ref):
    """mix_type='channel' (nn.Linear over D), whole E resident.

    Blocks: x (Bb,T,Dp); gamma/beta (T,1); w1t (Dp,Ep); b1 (1,Ep);
            w2t (Ep,Dp); b2 (1,Dp)."""
    bb, t, dp = x_ref.shape
    mxu_dt = w1t_ref.dtype
    inv_d = 1.0 / d_true

    x = x_ref[...]                                             # (Bb,T,Dp) f32
    # one-pass mean/var (sum + sum of squares); padded D columns are zero so
    # the sums are unaffected and we divide by the true D.
    mean = jnp.sum(x, axis=-1, keepdims=True) * inv_d
    var = jnp.maximum(jnp.sum(x * x, axis=-1, keepdims=True) * inv_d
                      - mean * mean, 0.0)
    xn = (x - mean) * lax.rsqrt(var + EPS)
    xn = xn * g_ref[...] + b_ref[...]                          # (T,1) affine

    xn2 = xn.reshape(bb * t, dp).astype(mxu_dt)                # big-M matmuls
    h = jnp.dot(xn2, w1t_ref[...],
                preferred_element_type=jnp.float32) + b1_ref[...]
    h = _gelu_exact(h)
    y = jnp.dot(h.astype(mxu_dt), w2t_ref[...],
                preferred_element_type=jnp.float32)
    y = y.reshape(bb, t, dp) + b2_ref[...]
    o_ref[...] = (y + x).astype(o_ref.dtype)


def _mlp_channel_stream_kernel(d_true, x_ref, g_ref, b_ref, w1t_ref, b1_ref,
                               w2t_ref, b2_ref, o_ref, xn_ref, acc_ref):
    """mix_type='channel' with the expansion dim E streamed in chunks (grid
    axis 1) so w1t/w2t never need to be fully resident (v7x 64 MiB VMEM at
    large D*E).  Output block is revisited across E; a VMEM f32 accumulator
    carries the partial layer-2 product."""
    e = pl.program_id(1)
    bb, t, dp = x_ref.shape
    mxu_dt = w1t_ref.dtype
    inv_d = 1.0 / d_true

    @pl.when(e == 0)
    def _():
        x = x_ref[...]
        mean = jnp.sum(x, axis=-1, keepdims=True) * inv_d
        var = jnp.maximum(jnp.sum(x * x, axis=-1, keepdims=True) * inv_d
                          - mean * mean, 0.0)
        xn_ref[...] = (x - mean) * lax.rsqrt(var + EPS) * g_ref[...] + b_ref[...]
        acc_ref[...] = x + b2_ref[...]        # residual + layer-2 bias, once

    xn2 = xn_ref[...].reshape(bb * t, dp).astype(mxu_dt)
    h = jnp.dot(xn2, w1t_ref[...],
                preferred_element_type=jnp.float32) + b1_ref[...]
    h = _gelu_exact(h)
    acc_ref[...] += jnp.dot(h.astype(mxu_dt), w2t_ref[...],
                            preferred_element_type=jnp.float32).reshape(bb, t, dp)

    @pl.when(e == pl.num_programs(1) - 1)
    def _():
        o_ref[...] = acc_ref[...].astype(o_ref.dtype)


def _mlp_token_kernel(d_true, x_ref, g_ref, b_ref, w1_ref, b1_ref, w2_ref,
                      b2_ref, o_ref):
    """mix_type='token' (Conv1d k=1 over the token axis).

    Blocks: x (Bb,T,Dp); gamma/beta/b2 (T,1); w1 (E,T); b1 (E,1); w2 (T,E).
    Weights stay 2-D (no broadcast_to batch copies); the batch block is an
    unrolled fori_loop of plain 2-D MXU dots that re-use the pushed weights.
    NOTE: for very small T the K=T contraction under-uses the MXU; a VPU
    weighted-sum or an (E,T)@(T,Bb*D) reformulation could be faster there --
    the well-supported 2-D dot form is kept for robustness."""
    bb = x_ref.shape[0]
    mxu_dt = w1_ref.dtype
    inv_d = 1.0 / d_true
    g = g_ref[...]
    bt = b_ref[...]
    b1c = b1_ref[...]
    b2c = b2_ref[...]

    def one_batch(b, carry):
        xb = x_ref[b]                                          # (T, Dp) f32
        mean = jnp.sum(xb, axis=-1, keepdims=True) * inv_d
        var = jnp.maximum(jnp.sum(xb * xb, axis=-1, keepdims=True) * inv_d
                          - mean * mean, 0.0)
        xn = (xb - mean) * lax.rsqrt(var + EPS) * g + bt
        h = jnp.dot(w1_ref[...], xn.astype(mxu_dt),
                    preferred_element_type=jnp.float32) + b1c   # (E, Dp)
        h = _gelu_exact(h)
        y = jnp.dot(w2_ref[...], h.astype(mxu_dt),
                    preferred_element_type=jnp.float32) + b2c   # (T, Dp)
        o_ref[b] = (y + xb).astype(o_ref.dtype)
        return carry

    lax.fori_loop(0, bb, one_batch, 0, unroll=True)


# --------------------------------------------------------------------------- #
# wrapper
# --------------------------------------------------------------------------- #
def mlp_layer(x, params, mix_type, mxu_dtype=jnp.bfloat16, e_chunk=None):
    """Pallas implementation of MLPLayer.forward.

    x: (B, T, D) float32 -- (batch, token_nr, dim).
    params: (gamma(T,), beta(T,), w1, b1, w2, b2)
      channel: w1 (E, D), b1 (E,), w2 (D, E), b2 (D,)
      token  : w1 (E, T), b1 (E,), w2 (T, E), b2 (T,)   (Conv1d k=1, squeezed)
    mxu_dtype: dtype of MXU matmul *operands* (default bfloat16 on every
      generation; accumulation and all elementwise math stay in f32, so only
      matmul rounding differs).  Pass jnp.float32 for bit-exact matmuls.
    e_chunk: channel path only -- force the E-streaming kernel with this chunk
      size (multiple of 128).  By default streaming is chosen automatically
      when resident weights would not comfortably fit the VMEM limit.
    """
    if mix_type not in ('channel', 'token'):
        raise ValueError(f"unknown mix_type: {mix_type}")
    if e_chunk is not None and mix_type != 'channel':
        raise ValueError("e_chunk only applies to mix_type='channel'")

    B, T, D = x.shape
    gamma, beta, w1, b1, w2, b2 = params
    E = w1.shape[0]
    witem = jnp.dtype(mxu_dtype).itemsize
    vmem_limit = _vmem_limit_bytes()

    def run(single_buffer):
        sb = single_buffer and hasattr(pl, "Buffered")
        n_w_buf = 1 if sb else 2
        gcol = gamma.reshape(T, 1)
        bcol = beta.reshape(T, 1)

        if mix_type == 'channel':
            Dp = _round_up(D, LANE)
            Ep = _round_up(E, LANE)
            xp = _pad_axis(x, 2, Dp)
            w1t = _pad_axis(_pad_axis(w1.T, 0, Dp), 1, Ep).astype(mxu_dtype)  # (Dp,Ep)
            w2t = _pad_axis(_pad_axis(w2.T, 0, Ep), 1, Dp).astype(mxu_dtype)  # (Ep,Dp)
            b1p = _pad_axis(b1.reshape(1, E), 1, Ep)                           # (1,Ep) f32
            b2p = _pad_axis(b2.reshape(1, D), 1, Dp)                           # (1,Dp) f32

            # ---- VMEM accounting ----
            w_res_bytes = n_w_buf * 2 * Dp * Ep * witem
            misc_bytes = (2 * _col_vmem_bytes(T, n_w_buf)
                          + n_w_buf * SUBLANE * 4 * (Ep + Dp)
                          + (1 << 20))                                         # slack
            stream = (e_chunk is not None) or (w_res_bytes > vmem_limit // 2)

            if not stream:
                # per batch element: x in/out (2 buffers each) + xn f32/bf16,
                # h f32/bf16, y f32 temporaries
                per_elem = T * (4 * Dp * 4 + (8 + witem) * Dp + (4 + witem) * Ep)
                budget = vmem_limit - w_res_bytes - misc_bytes
                Bb = _pick_block(B, max(1, budget // per_elem))
                kern = functools.partial(_mlp_channel_kernel, D)
                grid = (B // Bb,)
                in_specs = [
                    pl.BlockSpec((Bb, T, Dp), lambda i: (i, 0, 0)),
                    _resident_spec((T, 1), sb),
                    _resident_spec((T, 1), sb),
                    _resident_spec((Dp, Ep), sb),
                    _resident_spec((1, Ep), sb),
                    _resident_spec((Ep, Dp), sb),
                    _resident_spec((1, Dp), sb),
                ]
                out_specs = pl.BlockSpec((Bb, T, Dp), lambda i: (i, 0, 0))
                scratch = []
                dims = ("parallel",)
            else:
                if e_chunk is not None:
                    Ec = int(e_chunk)
                    if Ec % LANE != 0 or Ep % Ec != 0:
                        raise ValueError("e_chunk must be a multiple of 128 "
                                         "dividing the padded E")
                else:
                    Ec = _pick_e_chunk(Ep, Dp, witem, vmem_limit // 3)
                w_stream_bytes = 2 * 2 * Dp * Ec * witem       # double-buffered
                # x in/out + xn scratch + acc scratch + temps per batch element
                per_elem = T * (4 * Dp * 6 + (4 + witem) * Dp + (4 + witem) * Ec)
                budget = vmem_limit - w_stream_bytes - misc_bytes
                Bb = _pick_block(B, max(1, budget // per_elem))
                kern = functools.partial(_mlp_channel_stream_kernel, D)
                grid = (B // Bb, Ep // Ec)
                in_specs = [
                    pl.BlockSpec((Bb, T, Dp), lambda i, e: (i, 0, 0)),
                    _resident_spec((T, 1), sb),
                    _resident_spec((T, 1), sb),
                    pl.BlockSpec((Dp, Ec), lambda i, e: (0, e)),
                    pl.BlockSpec((1, Ec), lambda i, e: (0, e)),
                    pl.BlockSpec((Ec, Dp), lambda i, e: (e, 0)),
                    _resident_spec((1, Dp), sb),
                ]
                out_specs = pl.BlockSpec((Bb, T, Dp), lambda i, e: (i, 0, 0))
                scratch = [pltpu.VMEM((Bb, T, Dp), jnp.float32),   # xn
                           pltpu.VMEM((Bb, T, Dp), jnp.float32)]   # accumulator
                dims = ("parallel", "arbitrary")

            out = pl.pallas_call(
                kern,
                out_shape=jax.ShapeDtypeStruct((B, T, Dp), x.dtype),
                grid=grid,
                in_specs=in_specs,
                out_specs=out_specs,
                scratch_shapes=scratch,
                compiler_params=pltpu.CompilerParams(
                    dimension_semantics=dims, vmem_limit_bytes=vmem_limit),
            )(xp, gcol, bcol, w1t, b1p, w2t, b2p)
            return out[:, :, :D] if Dp != D else out

        else:  # 'token'
            Dp = _round_up(D, LANE)
            xp = _pad_axis(x, 2, Dp)
            w1m = w1.astype(mxu_dtype)           # (E, T)
            w2m = w2.astype(mxu_dtype)           # (T, E)
            b1c = b1.reshape(E, 1)
            b2c = b2.reshape(T, 1)

            w_res_bytes = n_w_buf * 2 * E * T * witem
            misc_bytes = (3 * _col_vmem_bytes(T, n_w_buf)
                          + _col_vmem_bytes(E, n_w_buf) + (1 << 20))
            # x in/out double-buffered per batch element; the per-iteration
            # temporaries (xn, h, y) are bounded by the fori_loop -> count once
            per_elem = 4 * T * Dp * 4
            temps = Dp * ((8 + witem) * T + (4 + witem) * E)
            budget = vmem_limit - w_res_bytes - misc_bytes - temps
            Bb = _pick_block(B, max(1, budget // per_elem))

            out = pl.pallas_call(
                functools.partial(_mlp_token_kernel, D),
                out_shape=jax.ShapeDtypeStruct((B, T, Dp), x.dtype),
                grid=(B // Bb,),
                in_specs=[
                    pl.BlockSpec((Bb, T, Dp), lambda i: (i, 0, 0)),
                    _resident_spec((T, 1), sb),
                    _resident_spec((T, 1), sb),
                    _resident_spec((E, T), sb),
                    _resident_spec((E, 1), sb),
                    _resident_spec((T, E), sb),
                    _resident_spec((T, 1), sb),
                ],
                out_specs=pl.BlockSpec((Bb, T, Dp), lambda i: (i, 0, 0)),
                compiler_params=pltpu.CompilerParams(
                    dimension_semantics=("parallel",),
                    vmem_limit_bytes=vmem_limit),
            )(xp, gcol, bcol, w1m, b1c, w2m, b2c)
            return out[:, :, :D] if Dp != D else out

    try:
        # resident weights/biases single-buffered (pipeline_mode=pl.Buffered(1))
        return run(single_buffer=True)
    except Exception:
        # this jax/Mosaic build rejects Buffered(1); fall back to the default
        # double-buffered resident blocks (numerically identical).
        return run(single_buffer=False)


# --------------------------------------------------------------------------- #
# pure-JAX reference (mirrors the PyTorch forward) + synthetic params
# --------------------------------------------------------------------------- #
def mlp_layer_ref(x, params, mix_type):
    gamma, beta, w1, b1, w2, b2 = params
    mean = x.mean(-1, keepdims=True)
    var = ((x - mean) ** 2).mean(-1, keepdims=True)
    xn = (x - mean) / jnp.sqrt(var + EPS)
    xn = xn * gamma[None, :, None] + beta[None, :, None]
    if mix_type == 'channel':
        h = jnp.einsum('btd,ed->bte', xn, w1) + b1
        h = _gelu_exact(h)
        y = jnp.einsum('bte,de->btd', h, w2) + b2
    else:
        h = jnp.einsum('et,btd->bed', w1, xn) + b1[None, :, None]
        h = _gelu_exact(h)
        y = jnp.einsum('te,bed->btd', w2, h) + b2[None, :, None]
    return y + x


def make_params(key, token_nr, dim, dim_exp, mix_type):
    """Deterministic synthetic parameters with the shapes MLPLayer.__init__
    implies (Conv1d k=1 weights (out,in,1) stored squeezed as (out,in))."""
    k1, k2, k3, k4, k5, k6 = jax.random.split(key, 6)
    gamma = 1.0 + 0.1 * jax.random.normal(k1, (token_nr,), jnp.float32)
    beta = 0.1 * jax.random.normal(k2, (token_nr,), jnp.float32)
    if mix_type == 'token':
        w1 = 0.1 * jax.random.normal(k3, (dim_exp, token_nr), jnp.float32)
        b1 = 0.1 * jax.random.normal(k4, (dim_exp,), jnp.float32)
        w2 = 0.1 * jax.random.normal(k5, (token_nr, dim_exp), jnp.float32)
        b2 = 0.1 * jax.random.normal(k6, (token_nr,), jnp.float32)
    else:
        w1 = 0.1 * jax.random.normal(k3, (dim_exp, dim), jnp.float32)
        b1 = 0.1 * jax.random.normal(k4, (dim_exp,), jnp.float32)
        w2 = 0.1 * jax.random.normal(k5, (dim, dim_exp), jnp.float32)
        b2 = 0.1 * jax.random.normal(k6, (dim,), jnp.float32)
    return (gamma, beta, w1, b1, w2, b2)


if __name__ == "__main__":
    B, TOKEN_NR, DIM, DIM_EXP = 2, 8, 40, 200   # exercises D/E padding too

    key = jax.random.PRNGKey(0)
    kx, kp_tok, kp_chn = jax.random.split(key, 3)
    x = jax.random.normal(kx, (B, TOKEN_NR, DIM), jnp.float32)

    failures = []

    def check(name, out, ref, atol, rtol):
        if not jnp.allclose(out, ref, atol=atol, rtol=rtol):
            failures.append(name)
            print(f"{name}: max abs err {float(jnp.max(jnp.abs(out - ref))):.3e}")

    for mix_type, kp in (('token', kp_tok), ('channel', kp_chn)):
        params = make_params(kp, TOKEN_NR, DIM, DIM_EXP, mix_type)
        ref = mlp_layer_ref(x, params, mix_type)

        # exact f32 MXU operands
        out = jax.block_until_ready(
            mlp_layer(x, params, mix_type, mxu_dtype=jnp.float32))
        check(f"{mix_type}/f32", out, ref, 1e-4, 1e-4)

        # default bf16 MXU operands (f32 accumulate / elementwise)
        out_bf = jax.block_until_ready(mlp_layer(x, params, mix_type))
        check(f"{mix_type}/bf16", out_bf, ref, 5e-2, 5e-2)

    # E-streaming channel kernel (the large-weight / v7x path), forced with a
    # small chunk so the multi-chunk accumulation is exercised here.
    params = make_params(kp_chn, TOKEN_NR, DIM, DIM_EXP, 'channel')
    ref = mlp_layer_ref(x, params, 'channel')
    out_s = jax.block_until_ready(
        mlp_layer(x, params, 'channel', mxu_dtype=jnp.float32, e_chunk=128))
    check("channel/stream-f32", out_s, ref, 1e-4, 1e-4)

    if not failures:
        print("KERNEL_OK")
</pallas_src>

<mosaic_0001>
module attributes {stable_mosaic.version = 11 : i64} {
  func.func @_mlp_token_kernel(%arg0: i32, %arg1: memref<1x8x128xf32, #tpu.memory_space<vmem>>, %arg2: memref<8x1xf32, #tpu.memory_space<vmem>>, %arg3: memref<8x1xf32, #tpu.memory_space<vmem>>, %arg4: memref<200x8xf32, #tpu.memory_space<vmem>>, %arg5: memref<200x1xf32, #tpu.memory_space<vmem>>, %arg6: memref<8x200xf32, #tpu.memory_space<vmem>>, %arg7: memref<8x1xf32, #tpu.memory_space<vmem>>, %arg8: memref<1x8x128xf32, #tpu.memory_space<vmem>>) attributes {dimension_semantics = [#tpu.dimension_semantics<parallel>], iteration_bounds = array<i64: 2>, scalar_prefetch = 0 : i64, scratch_operands = 0 : i64, tpu.core_type = #tpu.core_type<tc>, window_params = [{transform_indices = @transform_0, window_bounds = array<i64: 1, 8, 128>}, {pipeline_mode = #tpu.pipeline_mode<synchronous>, transform_indices = @transform_1, window_bounds = array<i64: 8, 1>}, {pipeline_mode = #tpu.pipeline_mode<synchronous>, transform_indices = @transform_2, window_bounds = array<i64: 8, 1>}, {pipeline_mode = #tpu.pipeline_mode<synchronous>, transform_indices = @transform_3, window_bounds = array<i64: 200, 8>}, {pipeline_mode = #tpu.pipeline_mode<synchronous>, transform_indices = @transform_4, window_bounds = array<i64: 200, 1>}, {pipeline_mode = #tpu.pipeline_mode<synchronous>, transform_indices = @transform_5, window_bounds = array<i64: 8, 200>}, {pipeline_mode = #tpu.pipeline_mode<synchronous>, transform_indices = @transform_6, window_bounds = array<i64: 8, 1>}, {transform_indices = @transform_7, window_bounds = array<i64: 1, 8, 128>}]} {
    %c0 = arith.constant 0 : index
    %c0_0 = arith.constant 0 : index
    %0 = vector.load %arg2[%c0, %c0_0] : memref<8x1xf32, #tpu.memory_space<vmem>>, vector<8x1xf32>
    %c0_1 = arith.constant 0 : index
    %c0_2 = arith.constant 0 : index
    %1 = vector.load %arg3[%c0_1, %c0_2] : memref<8x1xf32, #tpu.memory_space<vmem>>, vector<8x1xf32>
    %c0_3 = arith.constant 0 : index
    %c0_4 = arith.constant 0 : index
    %2 = vector.load %arg5[%c0_3, %c0_4] : memref<200x1xf32, #tpu.memory_space<vmem>>, vector<200x1xf32>
    %c0_5 = arith.constant 0 : index
    %c0_6 = arith.constant 0 : index
    %3 = vector.load %arg7[%c0_5, %c0_6] : memref<8x1xf32, #tpu.memory_space<vmem>>, vector<8x1xf32>
    %c0_i32 = arith.constant 0 : i32
    %4 = arith.index_cast %c0_i32 : i32 to index
    %c0_7 = arith.constant 0 : index
    %c0_8 = arith.constant 0 : index
    %5 = vector.load %arg1[%4, %c0_7, %c0_8] : memref<1x8x128xf32, #tpu.memory_space<vmem>>, vector<1x8x128xf32>
    %6 = vector.shape_cast %5 : vector<1x8x128xf32> to vector<8x128xf32>
    %cst = arith.constant dense<0.000000e+00> : vector<8xf32>
    %7 = vector.multi_reduction <add>, %6, %cst [1] : vector<8x128xf32> to vector<8xf32>
    %8 = vector.shape_cast %7 : vector<8xf32> to vector<8x1xf32>
    %cst_9 = arith.constant 2.500000e-02 : f32
    %9 = vector.broadcast %cst_9 : f32 to vector<8x1xf32>
    %10 = arith.mulf %8, %9 : vector<8x1xf32>
    %11 = arith.mulf %6, %6 : vector<8x128xf32>
    %cst_10 = arith.constant dense<0.000000e+00> : vector<8xf32>
    %12 = vector.multi_reduction <add>, %11, %cst_10 [1] : vector<8x128xf32> to vector<8xf32>
    %13 = vector.shape_cast %12 : vector<8xf32> to vector<8x1xf32>
    %cst_11 = arith.constant 2.500000e-02 : f32
    %14 = vector.broadcast %cst_11 : f32 to vector<8x1xf32>
    %15 = arith.mulf %13, %14 : vector<8x1xf32>
    %16 = arith.mulf %10, %10 : vector<8x1xf32>
    %17 = arith.subf %15, %16 : vector<8x1xf32>
    %cst_12 = arith.constant 0.000000e+00 : f32
    %18 = vector.broadcast %cst_12 : f32 to vector<8x1xf32>
    %19 = arith.maximumf %17, %18 : vector<8x1xf32>
    %20 = vector.broadcast %10 : vector<8x1xf32> to vector<8x128xf32>
    %21 = arith.subf %6, %20 : vector<8x128xf32>
    %cst_13 = arith.constant 9.99999974E-6 : f32
    %22 = vector.broadcast %cst_13 : f32 to vector<8x1xf32>
    %23 = arith.addf %19, %22 : vector<8x1xf32>
    %24 = math.rsqrt %23 : vector<8x1xf32>
    %25 = vector.broadcast %24 : vector<8x1xf32> to vector<8x128xf32>
    %26 = arith.mulf %21, %25 : vector<8x128xf32>
    %27 = vector.broadcast %0 : vector<8x1xf32> to vector<8x128xf32>
    %28 = arith.mulf %26, %27 : vector<8x128xf32>
    %29 = vector.broadcast %1 : vector<8x1xf32> to vector<8x128xf32>
    %30 = arith.addf %28, %29 : vector<8x128xf32>
    %c0_14 = arith.constant 0 : index
    %c0_15 = arith.constant 0 : index
    %31 = vector.load %arg4[%c0_14, %c0_15] : memref<200x8xf32, #tpu.memory_space<vmem>>, vector<200x8xf32>
    %cst_16 = arith.constant dense<0.000000e+00> : vector<200x128xf32>
    %32 = tpu.matmul %31, %30, %cst_16 {dimension_numbers = #tpu.dot_dimension_numbers<[1], [0], [0], [1], [0, 0, 1, 1], [], []>} : vector<200x8xf32>, vector<8x128xf32>, vector<200x128xf32> -> vector<200x128xf32>
    %33 = vector.broadcast %2 : vector<200x1xf32> to vector<200x128xf32>
    %34 = arith.addf %32, %33 : vector<200x128xf32>
    %cst_17 = arith.constant 5.000000e-01 : f32
    %35 = vector.broadcast %cst_17 : f32 to vector<200x128xf32>
    %36 = arith.mulf %35, %34 : vector<200x128xf32>
    %cst_18 = arith.constant 0.707106769 : f32
    %37 = vector.broadcast %cst_18 : f32 to vector<200x128xf32>
    %38 = arith.mulf %34, %37 : vector<200x128xf32>
    %39 = math.erf %38 : vector<200x128xf32>
    %cst_19 = arith.constant 1.000000e+00 : f32
    %40 = vector.broadcast %cst_19 : f32 to vector<200x128xf32>
    %41 = arith.addf %40, %39 : vector<200x128xf32>
    %42 = arith.mulf %36, %41 : vector<200x128xf32>
    %c0_20 = arith.constant 0 : index
    %c0_21 = arith.constant 0 : index
    %43 = vector.load %arg6[%c0_20, %c0_21] : memref<8x200xf32, #tpu.memory_space<vmem>>, vector<8x200xf32>
    %cst_22 = arith.constant dense<0.000000e+00> : vector<8x128xf32>
    %44 = tpu.matmul %43, %42, %cst_22 {dimension_numbers = #tpu.dot_dimension_numbers<[1], [0], [0], [1], [0, 0, 1, 1], [], []>} : vector<8x200xf32>, vector<200x128xf32>, vector<8x128xf32> -> vector<8x128xf32>
    %45 = vector.broadcast %3 : vector<8x1xf32> to vector<8x128xf32>
    %46 = arith.addf %44, %45 : vector<8x128xf32>
    %47 = arith.addf %46, %6 : vector<8x128xf32>
    %48 = arith.index_cast %c0_i32 : i32 to index
    %c0_23 = arith.constant 0 : index
    %c0_24 = arith.constant 0 : index
    %49 = vector.load %arg8[%48, %c0_23, %c0_24] : memref<1x8x128xf32, #tpu.memory_space<vmem>>, vector<1x8x128xf32>
    %50 = vector.shape_cast %49 : vector<1x8x128xf32> to vector<8x128xf32>
    %51 = vector.shape_cast %47 : vector<8x128xf32> to vector<1x8x128xf32>
    tpu.vector_store %arg8[%48, %c0_23, %c0_24], %51 {strides = array<i32>} : memref<1x8x128xf32, #tpu.memory_space<vmem>>, vector<1x8x128xf32>,
    %c1_i32 = arith.constant 1 : i32
    return
  }
  func.func @transform_0(%arg0: i32) -> (i32, i32, i32) {
    %c0_i32 = arith.constant 0 : i32
    %c0_i32_0 = arith.constant 0 : i32
    %c0_i32_1 = arith.constant 0 : i32
    return %arg0, %c0_i32, %c0_i32_0 : i32, i32, i32
  }
  func.func @transform_1(%arg0: i32) -> (i32, i32) {
    %c0_i32 = arith.constant 0 : i32
    %c0_i32_0 = arith.constant 0 : i32
    %c0_i32_1 = arith.constant 0 : i32
    return %c0_i32, %c0_i32_0 : i32, i32
  }
  func.func @transform_2(%arg0: i32) -> (i32, i32) {
    %c0_i32 = arith.constant 0 : i32
    %c0_i32_0 = arith.constant 0 : i32
    %c0_i32_1 = arith.constant 0 : i32
    return %c0_i32, %c0_i32_0 : i32, i32
  }
  func.func @transform_3(%arg0: i32) -> (i32, i32) {
    %c0_i32 = arith.constant 0 : i32
    %c0_i32_0 = arith.constant 0 : i32
    %c0_i32_1 = arith.constant 0 : i32
    return %c0_i32, %c0_i32_0 : i32, i32
  }
  func.func @transform_4(%arg0: i32) -> (i32, i32) {
    %c0_i32 = arith.constant 0 : i32
    %c0_i32_0 = arith.constant 0 : i32
    %c0_i32_1 = arith.constant 0 : i32
    return %c0_i32, %c0_i32_0 : i32, i32
  }
  func.func @transform_5(%arg0: i32) -> (i32, i32) {
    %c0_i32 = arith.constant 0 : i32
    %c0_i32_0 = arith.constant 0 : i32
    %c0_i32_1 = arith.constant 0 : i32
    return %c0_i32, %c0_i32_0 : i32, i32
  }
  func.func @transform_6(%arg0: i32) -> (i32, i32) {
    %c0_i32 = arith.constant 0 : i32
    %c0_i32_0 = arith.constant 0 : i32
    %c0_i32_1 = arith.constant 0 : i32
    return %c0_i32, %c0_i32_0 : i32, i32
  }
  func.func @transform_7(%arg0: i32) -> (i32, i32, i32) {
    %c0_i32 = arith.constant 0 : i32
    %c0_i32_0 = arith.constant 0 : i32
    %c0_i32_1 = arith.constant 0 : i32
    return %arg0, %c0_i32, %c0_i32_0 : i32, i32, i32
  }
}

module attributes {stable_mosaic.version = 11 : i64} {
  func.func @_mlp_token_kernel(%arg0: i32, %arg1: memref<1x8x128xf32, #tpu.memory_space<vmem>>, %arg2: memref<8x1xf32, #tpu.memory_space<vmem>>, %arg3: memref<8x1xf32, #tpu.memory_space<vmem>>, %arg4: memref<200x8xf32, #tpu.memory_space<vmem>>, %arg5: memref<200x1xf32, #tpu.memory_space<vmem>>, %arg6: memref<8x200xf32, #tpu.memory_space<vmem>>, %arg7: memref<8x1xf32, #tpu.memory_space<vmem>>, %arg8: memref<1x8x128xf32, #tpu.memory_space<vmem>>) attributes {dimension_semantics = [#tpu.dimension_semantics<parallel>], iteration_bounds = array<i64: 2>, scalar_prefetch = 0 : i64, scratch_operands = 0 : i64, tpu.core_type = #tpu.core_type<tc>, window_params = [{transform_indices = @transform_0, window_bounds = array<i64: 1, 8, 128>}, {pipeline_mode = #tpu.pipeline_mode<synchronous>, transform_indices = @transform_1, window_bounds = array<i64: 8, 1>}, {pipeline_mode = #tpu.pipeline_mode<synchronous>, transform_indices = @transform_2, window_bounds = array<i64: 8, 1>}, {pipeline_mode = #tpu.pipeline_mode<synchronous>, transform_indices = @transform_3, window_bounds = array<i64: 200, 8>}, {pipeline_mode = #tpu.pipeline_mode<synchronous>, transform_indices = @transform_4, window_bounds = array<i64: 200, 1>}, {pipeline_mode = #tpu.pipeline_mode<synchronous>, transform_indices = @transform_5, window_bounds = array<i64: 8, 200>}, {pipeline_mode = #tpu.pipeline_mode<synchronous>, transform_indices = @transform_6, window_bounds = array<i64: 8, 1>}, {transform_indices = @transform_7, window_bounds = array<i64: 1, 8, 128>}]} {
    %c0 = arith.constant 0 : index
    %c0_0 = arith.constant 0 : index
    %0 = vector.load %arg2[%c0, %c0_0] : memref<8x1xf32, #tpu.memory_space<vmem>>, vector<8x1xf32>
    %c0_1 = arith.constant 0 : index
    %c0_2 = arith.constant 0 : index
    %1 = vector.load %arg3[%c0_1, %c0_2] : memref<8x1xf32, #tpu.memory_space<vmem>>, vector<8x1xf32>
    %c0_3 = arith.constant 0 : index
    %c0_4 = arith.constant 0 : index
    %2 = vector.load %arg5[%c0_3, %c0_4] : memref<200x1xf32, #tpu.memory_space<vmem>>, vector<200x1xf32>
    %c0_5 = arith.constant 0 : index
    %c0_6 = arith.constant 0 : index
    %3 = vector.load %arg7[%c0_5, %c0_6] : memref<8x1xf32, #tpu.memory_space<vmem>>, vector<8x1xf32>
    %c0_i32 = arith.constant 0 : i32
    %4 = arith.index_cast %c0_i32 : i32 to index
    %c0_7 = arith.constant 0 : index
    %c0_8 = arith.constant 0 : index
    %5 = vector.load %arg1[%4, %c0_7, %c0_8] : memref<1x8x128xf32, #tpu.memory_space<vmem>>, vector<1x8x128xf32>
    %6 = vector.shape_cast %5 : vector<1x8x128xf32> to vector<8x128xf32>
    %cst = arith.constant dense<0.000000e+00> : vector<8xf32>
    %7 = vector.multi_reduction <add>, %6, %cst [1] : vector<8x128xf32> to vector<8xf32>
    %8 = vector.shape_cast %7 : vector<8xf32> to vector<8x1xf32>
    %cst_9 = arith.constant 2.500000e-02 : f32
    %9 = vector.broadcast %cst_9 : f32 to vector<8x1xf32>
    %10 = arith.mulf %8, %9 : vector<8x1xf32>
    %11 = arith.mulf %6, %6 : vector<8x128xf32>
    %cst_10 = arith.constant dense<0.000000e+00> : vector<8xf32>
    %12 = vector.multi_reduction <add>, %11, %cst_10 [1] : vector<8x128xf32> to vector<8xf32>
    %13 = vector.shape_cast %12 : vector<8xf32> to vector<8x1xf32>
    %cst_11 = arith.constant 2.500000e-02 : f32
    %14 = vector.broadcast %cst_11 : f32 to vector<8x1xf32>
    %15 = arith.mulf %13, %14 : vector<8x1xf32>
    %16 = arith.mulf %10, %10 : vector<8x1xf32>
    %17 = arith.subf %15, %16 : vector<8x1xf32>
    %cst_12 = arith.constant 0.000000e+00 : f32
    %18 = vector.broadcast %cst_12 : f32 to vector<8x1xf32>
    %19 = arith.maximumf %17, %18 : vector<8x1xf32>
    %20 = vector.broadcast %10 : vector<8x1xf32> to vector<8x128xf32>
    %21 = arith.subf %6, %20 : vector<8x128xf32>
    %cst_13 = arith.constant 9.99999974E-6 : f32
    %22 = vector.broadcast %cst_13 : f32 to vector<8x1xf32>
    %23 = arith.addf %19, %22 : vector<8x1xf32>
    %24 = math.rsqrt %23 : vector<8x1xf32>
    %25 = vector.broadcast %24 : vector<8x1xf32> to vector<8x128xf32>
    %26 = arith.mulf %21, %25 : vector<8x128xf32>
    %27 = vector.broadcast %0 : vector<8x1xf32> to vector<8x128xf32>
    %28 = arith.mulf %26, %27 : vector<8x128xf32>
    %29 = vector.broadcast %1 : vector<8x1xf32> to vector<8x128xf32>
    %30 = arith.addf %28, %29 : vector<8x128xf32>
    %c0_14 = arith.constant 0 : index
    %c0_15 = arith.constant 0 : index
    %31 = vector.load %arg4[%c0_14, %c0_15] : memref<200x8xf32, #tpu.memory_space<vmem>>, vector<200x8xf32>
    %cst_16 = arith.constant dense<0.000000e+00> : vector<200x128xf32>
    %32 = tpu.matmul %31, %30, %cst_16 {dimension_numbers = #tpu.dot_dimension_numbers<[1], [0], [0], [1], [0, 0, 1, 1], [], []>} : vector<200x8xf32>, vector<8x128xf32>, vector<200x128xf32> -> vector<200x128xf32>
    %33 = vector.broadcast %2 : vector<200x1xf32> to vector<200x128xf32>
    %34 = arith.addf %32, %33 : vector<200x128xf32>
    %cst_17 = arith.constant 5.000000e-01 : f32
    %35 = vector.broadcast %cst_17 : f32 to vector<200x128xf32>
    %36 = arith.mulf %35, %34 : vector<200x128xf32>
    %cst_18 = arith.constant 0.707106769 : f32
    %37 = vector.broadcast %cst_18 : f32 to vector<200x128xf32>
    %38 = arith.mulf %34, %37 : vector<200x128xf32>
    %39 = math.erf %38 : vector<200x128xf32>
    %cst_19 = arith.constant 1.000000e+00 : f32
    %40 = vector.broadcast %cst_19 : f32 to vector<200x128xf32>
    %41 = arith.addf %40, %39 : vector<200x128xf32>
    %42 = arith.mulf %36, %41 : vector<200x128xf32>
    %c0_20 = arith.constant 0 : index
    %c0_21 = arith.constant 0 : index
    %43 = vector.load %arg6[%c0_20, %c0_21] : memref<8x200xf32, #tpu.memory_space<vmem>>, vector<8x200xf32>
    %cst_22 = arith.constant dense<0.000000e+00> : vector<8x128xf32>
    %44 = tpu.matmul %43, %42, %cst_22 {dimension_numbers = #tpu.dot_dimension_numbers<[1], [0], [0], [1], [0, 0, 1, 1], [], []>} : vector<8x200xf32>, vector<200x128xf32>, vector<8x128xf32> -> vector<8x128xf32>
    %45 = vector.broadcast %3 : vector<8x1xf32> to vector<8x128xf32>
    %46 = arith.addf %44, %45 : vector<8x128xf32>
    %47 = arith.addf %46, %6 : vector<8x128xf32>
    %48 = arith.index_cast %c0_i32 : i32 to index
    %c0_23 = arith.constant 0 : index
    %c0_24 = arith.constant 0 : index
    %49 = vector.load %arg8[%48, %c0_23, %c0_24] : memref<1x8x128xf32, #tpu.memory_space<vmem>>, vector<1x8x128xf32>
    %50 = vector.shape_cast %49 : vector<1x8x128xf32> to vector<8x128xf32>
    %51 = vector.shape_cast %47 : vector<8x128xf32> to vector<1x8x128xf32>
    tpu.vector_store %arg8[%48, %c0_23, %c0_24], %51 {strides = array<i32>} : memref<1x8x128xf32, #tpu.memory_space<vmem>>, vector<1x8x128xf32>,
    %c1_i32 = arith.constant 1 : i32
    return
  }
  func.func @transform_0(%arg0: i32) -> (i32, i32, i32) {
    %c0_i32 = arith.constant 0 : i32
    %c0_i32_0 = arith.constant 0 : i32
    %c0_i32_1 = arith.constant 0 : i32
    return %arg0, %c0_i32, %c0_i32_0 : i32, i32, i32
  }
  func.func @transform_1(%arg0: i32) -> (i32, i32) {
    %c0_i32 = arith.constant 0 : i32
    %c0_i32_0 = arith.constant 0 : i32
    %c0_i32_1 = arith.constant 0 : i32
    return %c0_i32, %c0_i32_0 : i32, i32
  }
  func.func @transform_2(%arg0: i32) -> (i32, i32) {
    %c0_i32 = arith.constant 0 : i32
    %c0_i32_0 = arith.constant 0 : i32
    %c0_i32_1 = arith.constant 0 : i32
    return %c0_i32, %c0_i32_0 : i32, i32
  }
  func.func @transform_3(%arg0: i32) -> (i32, i32) {
    %c0_i32 = arith.constant 0 : i32
    %c0_i32_0 = arith.constant 0 : i32
    %c0_i32_1 = arith.constant 0 : i32
    return %c0_i32, %c0_i32_0 : i32, i32
  }
  func.func @transform_4(%arg0: i32) -> (i32, i32) {
    %c0_i32 = arith.constant 0 : i32
    %c0_i32_0 = arith.constant 0 : i32
    %c0_i32_1 = arith.constant 0 : i32
    return %c0_i32, %c0_i32_0 : i32, i32
  }
  func.func @transform_5(%arg0: i32) -> (i32, i32) {
    %c0_i32 = arith.constant 0 : i32
    %c0_i32_0 = arith.constant 0 : i32
    %c0_i32_1 = arith.constant 0 : i32
    return %c0_i32, %c0_i32_0 : i32, i32
  }
  func.func @transform_6(%arg0: i32) -> (i32, i32) {
    %c0_i32 = arith.constant 0 : i32
    %c0_i32_0 = arith.constant 0 : i32
    %c0_i32_1 = arith.constant 0 : i32
    return %c0_i32, %c0_i32_0 : i32, i32
  }
  func.func @transform_7(%arg0: i32) -> (i32, i32, i32) {
    %c0_i32 = arith.constant 0 : i32
    %c0_i32_0 = arith.constant 0 : i32
    %c0_i32_1 = arith.constant 0 : i32
    return %arg0, %c0_i32, %c0_i32_0 : i32, i32, i32
  }
}

</mosaic_0001>

<llo_original>
// kernel: tpu_custom_call.1
$region0: #{tpu_custom_call.1}
  #allocation0 [shape = 'u32[]', space=smem, size = 0x4, offset = 0x4, fixed_abs, tag = 'smem constant byte address 0x4 - core index']
  #allocation1 [shape = 'u32[144,128]{1,0:T(1,128)}', space=vmem, size = 0x12000, scoped, tag = 'internal scratch']
  %s0 = inlined_call_operand.vmem [shape: f32[2,8,128], index: 0, kind: input, shape index: {}]
  %s1 = inlined_call_operand.vmem [shape: f32[8,1], index: 1, kind: input, shape index: {}]
  %s2 = inlined_call_operand.vmem [shape: f32[8,1], index: 2, kind: input, shape index: {}]
  %s3 = inlined_call_operand.vmem [shape: f32[200,8], index: 3, kind: input, shape index: {}]
  %s4 = inlined_call_operand.vmem [shape: f32[200,1], index: 4, kind: input, shape index: {}]
  %s5 = inlined_call_operand.vmem [shape: f32[8,200], index: 5, kind: input, shape index: {}]
  %s6 = inlined_call_operand.vmem [shape: f32[8,1], index: 6, kind: input, shape index: {}]
  %s7 = inlined_call_operand.hbm [shape: f32[2,8,128], index: 7, kind: output, shape index: {}]
  %s8 = sld [smem:[#allocation0]]
  $region61: #{tpu_custom_call.1} parent=0
    _
  %s10 = ssub.s32 1, %s8
  %s11 = scalar_select 0, %s10, %s8
  $region1: #{tpu_custom_call.1} parent=0
    #allocation2 [shape = 'u8[8192]{0}', space=vmem, size = 0x2000, scoped, tag = 'output window, operand 0']
    #allocation3 [shape = 's32[2]{0}', space=sflag, size = 0x8, scoped, tag = 'scoped memory for tpu_custom_call.1']
    %12 = vsyncpa [#allocation3], 0
    %s13 = scalar_lea.sflag [#allocation3], 1
    %14 = vsyncpa %s13, 0
    loop: start=0, step=1, limit=4
    $region2: #{tpu_custom_call.1} parent=1 // loop_pre_header
      _
    $region3: #{tpu_custom_call.1} parent=1 // loop_header
      %s16 = sphi 0, %s20
      %p17 = scmp.ge.s32.totalorder %s16, 4
      %s26 = sphi 0, %s28
      %s29 = sphi 0, %s26
      %s30 = sphi 0, %s29
      %s46 = sphi 0, %s30
      %s50 = sphi 0, %s50
      %s52 = sphi 0, %s50
      %s53 = sphi 0, %s52
      %s67 = sphi 0, %s53
      %s71 = sphi 0, %s71
      %s73 = sphi 0, %s71
      %s74 = sphi 0, %s73
      %s88 = sphi 0, %s74
      %s92 = sphi 0, %s92
      %s94 = sphi 0, %s92
      %s95 = sphi 0, %s94
      %s109 = sphi 0, %s95
      %s113 = sphi 0, %s113
      %s115 = sphi 0, %s113
      %s116 = sphi 0, %s115
      %s130 = sphi 0, %s116
      %s134 = sphi 0, %s134
      %s136 = sphi 0, %s134
      %s137 = sphi 0, %s136
      %s151 = sphi 0, %s137
      %s155 = sphi 0, %s155
      %s157 = sphi 0, %s155
      %s158 = sphi 0, %s157
      %s172 = sphi 0, %s158
      %s178 = sphi 0, %s180
      %s181 = sphi 0, %s178
      %s182 = sphi 0, %s181
      %s198 = sphi 0, %s182
    $region4: #{tpu_custom_call.1} parent=1 // loop_header_branch
      %19 = sbr.rel (%p17) target = $region8
    $region5: #{tpu_custom_call.1} parent=1 // loop_body
      %s21 = ssub.s32 %s16, 1
      %s22 = ssub.s32 %s16, 2
      %s23 = sadd.s32 %s16, 1
      %s24 = ssub.s32 %s16, %s23
      %p25 = scmp.eq.s32.totalorder %s24, 0
      %s27 = sadd.s32 %s26, 1
      %s28 = scalar_select %p25, %s26, %s27
      %p31 = pneg %p25
      %p32 = scmp.eq.s32.totalorder %s16, 1
      %p33 = por %p31, %p32
      %p34 = scmp.ne.s32.totalorder %s26, %s29
      %p35 = scmp.eq.s32.totalorder %s16, 0
      %p36 = por %p34, %p35
      %p37 = scmp.ne.s32.totalorder %s26, %s29
      %p38 = scmp.eq.s32.totalorder %s21, 1
      %p39 = por %p37, %p38
      %p40 = scmp.ne.s32.totalorder %s29, %s30
      %p41 = scmp.eq.s32.totalorder %s21, 0
      %p42 = por %p40, %p41
      %p43 = scmp.ne.s32.totalorder %s29, %s30
      %p44 = scmp.eq.s32.totalorder %s22, 1
      %p45 = por %p43, %p44
      %p47 = scmp.ne.s32.totalorder %s30, %s46
      %p48 = scmp.eq.s32.totalorder %s22, 0
      %p49 = por %p47, %p48
      %s51 = sadd.s32 %s50, 1
      %p54 = scmp.eq.s32.totalorder %s16, 1
      %p55 = scmp.ne.s32.totalorder %s50, %s52
      %p56 = scmp.eq.s32.totalorder %s16, 0
      %p57 = por %p55, %p56
      %p58 = scmp.ne.s32.totalorder %s50, %s52
      %p59 = scmp.eq.s32.totalorder %s21, 1
      %p60 = por %p58, %p59
      %p61 = scmp.ne.s32.totalorder %s52, %s53
      %p62 = scmp.eq.s32.totalorder %s21, 0
      %p63 = por %p61, %p62
      %p64 = scmp.ne.s32.totalorder %s52, %s53
      %p65 = scmp.eq.s32.totalorder %s22, 1
      %p66 = por %p64, %p65
      %p68 = scmp.ne.s32.totalorder %s53, %s67
      %p69 = scmp.eq.s32.totalorder %s22, 0
      %p70 = por %p68, %p69
      %s72 = sadd.s32 %s71, 1
      %p75 = scmp.eq.s32.totalorder %s16, 1
      %p76 = scmp.ne.s32.totalorder %s71, %s73
      %p77 = scmp.eq.s32.totalorder %s16, 0
      %p78 = por %p76, %p77
      %p79 = scmp.ne.s32.totalorder %s71, %s73
      %p80 = scmp.eq.s32.totalorder %s21, 1
      %p81 = por %p79, %p80
      %p82 = scmp.ne.s32.totalorder %s73, %s74
      %p83 = scmp.eq.s32.totalorder %s21, 0
      %p84 = por %p82, %p83
      %p85 = scmp.ne.s32.totalorder %s73, %s74
      %p86 = scmp.eq.s32.totalorder %s22, 1
      %p87 = por %p85, %p86
      %p89 = scmp.ne.s32.totalorder %s74, %s88
      %p90 = scmp.eq.s32.totalorder %s22, 0
      %p91 = por %p89, %p90
      %s93 = sadd.s32 %s92, 1
      %p96 = scmp.eq.s32.totalorder %s16, 1
      %p97 = scmp.ne.s32.totalorder %s92, %s94
      %p98 = scmp.eq.s32.totalorder %s16, 0
      %p99 = por %p97, %p98
      %p100 = scmp.ne.s32.totalorder %s92, %s94
      %p101 = scmp.eq.s32.totalorder %s21, 1
      %p102 = por %p100, %p101
      %p103 = scmp.ne.s32.totalorder %s94, %s95
      %p104 = scmp.eq.s32.totalorder %s21, 0
      %p105 = por %p103, %p104
      %p106 = scmp.ne.s32.totalorder %s94, %s95
      %p107 = scmp.eq.s32.totalorder %s22, 1
      %p108 = por %p106, %p107
      %p110 = scmp.ne.s32.totalorder %s95, %s109
      %p111 = scmp.eq.s32.totalorder %s22, 0
      %p112 = por %p110, %p111
      %s114 = sadd.s32 %s113, 1
      %p117 = scmp.eq.s32.totalorder %s16, 1
      %p118 = scmp.ne.s32.totalorder %s113, %s115
      %p119 = scmp.eq.s32.totalorder %s16, 0
      %p120 = por %p118, %p119
      %p121 = scmp.ne.s32.totalorder %s113, %s115
      %p122 = scmp.eq.s32.totalorder %s21, 1
      %p123 = por %p121, %p122
      %p124 = scmp.ne.s32.totalorder %s115, %s116
      %p125 = scmp.eq.s32.totalorder %s21, 0
      %p126 = por %p124, %p125
      %p127 = scmp.ne.s32.totalorder %s115, %s116
      %p128 = scmp.eq.s32.totalorder %s22, 1
      %p129 = por %p127, %p128
      %p131 = scmp.ne.s32.totalorder %s116, %s130
      %p132 = scmp.eq.s32.totalorder %s22, 0
      %p133 = por %p131, %p132
      %s135 = sadd.s32 %s134, 1
      %p138 = scmp.eq.s32.totalorder %s16, 1
      %p139 = scmp.ne.s32.totalorder %s134, %s136
      %p140 = scmp.eq.s32.totalorder %s16, 0
      %p141 = por %p139, %p140
      %p142 = scmp.ne.s32.totalorder %s134, %s136
      %p143 = scmp.eq.s32.totalorder %s21, 1
      %p144 = por %p142, %p143
      %p145 = scmp.ne.s32.totalorder %s136, %s137
      %p146 = scmp.eq.s32.totalorder %s21, 0
      %p147 = por %p145, %p146
      %p148 = scmp.ne.s32.totalorder %s136, %s137
      %p149 = scmp.eq.s32.totalorder %s22, 1
      %p150 = por %p148, %p149
      %p152 = scmp.ne.s32.totalorder %s137, %s151
      %p153 = scmp.eq.s32.totalorder %s22, 0
      %p154 = por %p152, %p153
      %s156 = sadd.s32 %s155, 1
      %p159 = scmp.eq.s32.totalorder %s16, 1
      %p160 = scmp.ne.s32.totalorder %s155, %s157
      %p161 = scmp.eq.s32.totalorder %s16, 0
      %p162 = por %p160, %p161
      %p163 = scmp.ne.s32.totalorder %s155, %s157
      %p164 = scmp.eq.s32.totalorder %s21, 1
      %p165 = por %p163, %p164
      %p166 = scmp.ne.s32.totalorder %s157, %s158
      %p167 = scmp.eq.s32.totalorder %s21, 0
      %p168 = por %p166, %p167
      %p169 = scmp.ne.s32.totalorder %s157, %s158
      %p170 = scmp.eq.s32.totalorder %s22, 1
      %p171 = por %p169, %p170
      %p173 = scmp.ne.s32.totalorder %s158, %s172
      %p174 = scmp.eq.s32.totalorder %s22, 0
      %p175 = por %p173, %p174
      %s176 = ssub.s32 %s16, %s23
      %p177 = scmp.eq.s32.totalorder %s176, 0
      %s179 = sadd.s32 %s178, 1
      %s180 = scalar_select %p177, %s178, %s179
      %p183 = pneg %p177
      %p184 = scmp.eq.s32.totalorder %s16, 1
      %p185 = por %p183, %p184
      %p186 = scmp.ne.s32.totalorder %s178, %s181
      %p187 = scmp.eq.s32.totalorder %s16, 0
      %p188 = por %p186, %p187
      %p189 = scmp.ne.s32.totalorder %s178, %s181
      %p190 = scmp.eq.s32.totalorder %s21, 1
      %p191 = por %p189, %p190
      %p192 = scmp.ne.s32.totalorder %s181, %s182
      %p193 = scmp.eq.s32.totalorder %s21, 0
      %p194 = por %p192, %p193
      %p195 = scmp.ne.s32.totalorder %s181, %s182
      %p196 = scmp.eq.s32.totalorder %s22, 1
      %p197 = por %p195, %p196
      %p199 = scmp.ne.s32.totalorder %s182, %s198
      %p200 = scmp.eq.s32.totalorder %s22, 0
      %p201 = por %p199, %p200
      %p202 = scmp.le.s32.totalorder 1, %s16
      %p203 = scmp.lt.s32.totalorder %s16, 3
      %p204 = pnand %p202, %p203
      %p205 = pneg %p204
      // Predicated region
      $region9: #{tpu_custom_call.1} parent=5 // pred_check
        _
      $region10: #{tpu_custom_call.1} parent=5 // pred_check_branch
        %207 = sbr.rel (%p204) target = $region12
      $region11: #{tpu_custom_call.1} parent=5 // pred_region
        %s208 = ssub.s32 %s16, 1
        // Predicated region
        $region13: #{tpu_custom_call.1} parent=11 // pred_check
          %p209 = pneg %p63
        $region14: #{tpu_custom_call.1} parent=11 // pred_check_branch
          %211 = sbr.rel (%p209) target = $region16
        $region15: #{tpu_custom_call.1} parent=11 // pred_region
          _
        $region16: #{tpu_custom_call.1} parent=11 // pred_fallthru
          _
        // Predicated region
        $region17: #{tpu_custom_call.1} parent=11 // pred_check
          %p212 = pneg %p84
        $region18: #{tpu_custom_call.1} parent=11 // pred_check_branch
          %214 = sbr.rel (%p212) target = $region20
        $region19: #{tpu_custom_call.1} parent=11 // pred_region
          _
        $region20: #{tpu_custom_call.1} parent=11 // pred_fallthru
          _
        // Predicated region
        $region21: #{tpu_custom_call.1} parent=11 // pred_check
          %p215 = pneg %p105
        $region22: #{tpu_custom_call.1} parent=11 // pred_check_branch
          %217 = sbr.rel (%p215) target = $region24
        $region23: #{tpu_custom_call.1} parent=11 // pred_region
          _
        $region24: #{tpu_custom_call.1} parent=11 // pred_fallthru
          _
        // Predicated region
        $region25: #{tpu_custom_call.1} parent=11 // pred_check
          %p218 = pneg %p126
        $region26: #{tpu_custom_call.1} parent=11 // pred_check_branch
          %220 = sbr.rel (%p218) target = $region28
        $region27: #{tpu_custom_call.1} parent=11 // pred_region
          _
        $region28: #{tpu_custom_call.1} parent=11 // pred_fallthru
          _
        // Predicated region
        $region29: #{tpu_custom_call.1} parent=11 // pred_check
          %p221 = pneg %p147
        $region30: #{tpu_custom_call.1} parent=11 // pred_check_branch
          %223 = sbr.rel (%p221) target = $region32
        $region31: #{tpu_custom_call.1} parent=11 // pred_region
          _
        $region32: #{tpu_custom_call.1} parent=11 // pred_fallthru
          _
        // Predicated region
        $region33: #{tpu_custom_call.1} parent=11 // pred_check
          %p224 = pneg %p168
        $region34: #{tpu_custom_call.1} parent=11 // pred_check_branch
          %226 = sbr.rel (%p224) target = $region36
        $region35: #{tpu_custom_call.1} parent=11 // pred_region
          _
        $region36: #{tpu_custom_call.1} parent=11 // pred_fallthru
          _
      $region12: #{tpu_custom_call.1} parent=5 // pred_fallthru
        _
      %p227 = scmp.lt.s32.totalorder %s16, 2
      // Predicated region
      $region37: #{tpu_custom_call.1} parent=5 // pred_check
        %p228 = pneg %p227
      $region38: #{tpu_custom_call.1} parent=5 // pred_check_branch
        %230 = sbr.rel (%p228) target = $region40
      $region39: #{tpu_custom_call.1} parent=5 // pred_region
        // Predicated region
        $region41: #{tpu_custom_call.1} parent=39 // pred_check
          %p231 = pneg %p36
        $region42: #{tpu_custom_call.1} parent=39 // pred_check_branch
          %233 = sbr.rel (%p231) target = $region44
        $region43: #{tpu_custom_call.1} parent=39 // pred_region
          %p234 = scmp.lt.s32.totalorder %s16, 1
          %s235 = scalar_select %p234, %s16, 1
          %s236 = smul.addr %s235, 8
          %s237 = scalar_lea.vmem %s0, %s236
        $region44: #{tpu_custom_call.1} parent=39 // pred_fallthru
          _
      $region40: #{tpu_custom_call.1} parent=5 // pred_fallthru
        _
      %p238 = scmp.le.s32.totalorder 1, %s16
      %p239 = scmp.lt.s32.totalorder %s16, 3
      %p240 = pnand %p238, %p239
      %p241 = pneg %p240
      // Predicated region
      $region45: #{tpu_custom_call.1} parent=5 // pred_check
        _
      $region46: #{tpu_custom_call.1} parent=5 // pred_check_branch
        %243 = sbr.rel (%p240) target = $region48
      $region47: #{tpu_custom_call.1} parent=5 // pred_region
        %s244 = ssub.s32 %s16, 1
        %p245 = scmp.lt.s32.totalorder %s21, 1
        %s246 = scalar_select %p245, %s21, 1
        %s247 = smul.addr %s246, 8
        %s248 = scalar_lea.vmem %s0, %s247
        %p249 = pneg %p42
        %p250 = pneg %p39
        %p251 = pneg %p63
        %p252 = pneg %p60
        %p253 = pneg %p84
        %p254 = pneg %p81
        %p255 = pneg %p105
        %p256 = pneg %p102
        %p257 = pneg %p126
        %p258 = pneg %p123
        %p259 = pneg %p147
        %p260 = pneg %p144
        %p261 = pneg %p168
        %p262 = pneg %p165
        %p263 = pneg %p194
        %p264 = pneg %p191
        %s265 = sand.u32 %s181, 1
        %s266 = scalar_lea.sflag [#allocation3], %s265
        %s267 = sand.u32 %s181, 1
        %s268 = smul.addr %s267, 8
        %s269 = scalar_lea.vmem [#allocation2], %s268
        %p270 = scmp.lt.s32.totalorder %s21, 1
        %s271 = scalar_select %p270, %s21, 1
        %s272 = smul.addr %s271, 8
        %s273 = scalar_lea.vmem %s0, %s272
        %v274 = vld [vmem:[%s1] sm:$0xff]
        %v275 = vld [vmem:[%s2] sm:$0xff]
        %v276 = vld [vmem:[%s4] sm:$0xff]
        %v277 = vld [vmem:[%s4 + $0x8] sm:$0xff]
        %v278 = vld [vmem:[%s4 + $0x10] sm:$0xff]
        %v279 = vld [vmem:[%s4 + $0x18] sm:$0xff]
        %v280 = vld [vmem:[%s4 + $0x20] sm:$0xff]
        %v281 = vld [vmem:[%s4 + $0x28] sm:$0xff]
        %v282 = vld [vmem:[%s4 + $0x30] sm:$0xff]
        %v283 = vld [vmem:[%s4 + $0x38] sm:$0xff]
        %v284 = vld [vmem:[%s4 + $0x40] sm:$0xff]
        %v285 = vld [vmem:[%s4 + $0x48] sm:$0xff]
        %v286 = vld [vmem:[%s4 + $0x50] sm:$0xff]
        %v287 = vld [vmem:[%s4 + $0x58] sm:$0xff]
        %v288 = vld [vmem:[%s4 + $0x60] sm:$0xff]
        %v289 = vld [vmem:[%s4 + $0x68] sm:$0xff]
        %v290 = vld [vmem:[%s4 + $0x70] sm:$0xff]
        %v291 = vld [vmem:[%s4 + $0x78] sm:$0xff]
        %v292 = vld [vmem:[%s4 + $0x80] sm:$0xff]
        %v293 = vld [vmem:[%s4 + $0x88] sm:$0xff]
        %v294 = vld [vmem:[%s4 + $0x90] sm:$0xff]
        %v295 = vld [vmem:[%s4 + $0x98] sm:$0xff]
        %v296 = vld [vmem:[%s4 + $0xa0] sm:$0xff]
        %v297 = vld [vmem:[%s4 + $0xa8] sm:$0xff]
        %v298 = vld [vmem:[%s4 + $0xb0] sm:$0xff]
        %v299 = vld [vmem:[%s4 + $0xb8] sm:$0xff]
        %v300 = vld [vmem:[%s4 + $0xc0] sm:$0xff]
        %v301 = vld [vmem:[%s6] sm:$0xff]
        %v302 = vld [vmem:[%s273] sm:$0xff]
        %303 = vadd.xlane.f32.xlu0 %v302
        %v304 = vpop.xlane.xlu0 %303
        %v305 = vmul.f32 %v304, 0.025
        %v306 = vmul.f32 %v302, %v302
        %307 = vadd.xlane.f32.xlu0 %v306
        %v308 = vpop.xlane.xlu0 %307
        %v309 = vmul.f32 %v308, 0.025
        %v310 = vmul.f32 %v305, %v305
        %v311 = vsub.f32 %v309, %v310
        %v312 = vmax.f32 %v311, 0.0
        %v313 = vsub.f32 %v302, %v305
        %v314 = vadd.f32 %v312, 1e-05
        %v315 = vrsqrt.pop %v314
        %v316 = vmul.f32 %v313, %v315
        %318 = vset.pattern.permute.xlu0 0
        %319 = vperm.xlu0 %318, %v274
        %v320 = vpop.permute.xlu0 %319
        %v322 = vmul.f32 %v316, %v320
        %324 = vset.pattern.permute.xlu0 0
        %325 = vperm.xlu0 %324, %v275
        %v326 = vpop.permute.xlu0 %325
        %v328 = vadd.f32 %v322, %v326
        %v329 = vld [vmem:[%s3] sm:$0xff]
        %v330 = vld [vmem:[%s3 + $0x8] sm:$0xff]
        %v331 = vld [vmem:[%s3 + $0x10] sm:$0xff]
        %v332 = vld [vmem:[%s3 + $0x18] sm:$0xff]
        %v333 = vld [vmem:[%s3 + $0x20] sm:$0xff]
        %v334 = vld [vmem:[%s3 + $0x28] sm:$0xff]
        %v335 = vld [vmem:[%s3 + $0x30] sm:$0xff]
        %v336 = vld [vmem:[%s3 + $0x38] sm:$0xff]
        %v337 = vld [vmem:[%s3 + $0x40] sm:$0xff]
        %v338 = vld [vmem:[%s3 + $0x48] sm:$0xff]
        %v339 = vld [vmem:[%s3 + $0x50] sm:$0xff]
        %v340 = vld [vmem:[%s3 + $0x58] sm:$0xff]
        %v341 = vld [vmem:[%s3 + $0x60] sm:$0xff]
        %v342 = vld [vmem:[%s3 + $0x68] sm:$0xff]
        %v343 = vld [vmem:[%s3 + $0x70] sm:$0xff]
        %v344 = vld [vmem:[%s3 + $0x78] sm:$0xff]
        %v345 = vld [vmem:[%s3 + $0x80] sm:$0xff]
        %v346 = vld [vmem:[%s3 + $0x88] sm:$0xff]
        %v347 = vld [vmem:[%s3 + $0x90] sm:$0xff]
        %v348 = vld [vmem:[%s3 + $0x98] sm:$0xff]
        %v349 = vld [vmem:[%s3 + $0xa0] sm:$0xff]
        %v350 = vld [vmem:[%s3 + $0xa8] sm:$0xff]
        %v351 = vld [vmem:[%s3 + $0xb0] sm:$0xff]
        %v352 = vld [vmem:[%s3 + $0xb8] sm:$0xff]
        %v353 = vld [vmem:[%s3 + $0xc0] sm:$0xff]
        %355 = vset.pattern.permute.xlu0 0
        %356 = vperm.xlu0 %355, %v276
        %v357 = vpop.permute.xlu0 %356
        %360 = vset.pattern.permute.xlu0 0
        %361 = vperm.xlu0 %360, %v277
        %v362 = vpop.permute.xlu0 %361
        %365 = vset.pattern.permute.xlu0 0
        %366 = vperm.xlu0 %365, %v278
        %v367 = vpop.permute.xlu0 %366
        %370 = vset.pattern.permute.xlu0 0
        %371 = vperm.xlu0 %370, %v279
        %v372 = vpop.permute.xlu0 %371
        %375 = vset.pattern.permute.xlu0 0
        %376 = vperm.xlu0 %375, %v280
        %v377 = vpop.permute.xlu0 %376
        %380 = vset.pattern.permute.xlu0 0
        %381 = vperm.xlu0 %380, %v281
        %v382 = vpop.permute.xlu0 %381
        %385 = vset.pattern.permute.xlu0 0
        %386 = vperm.xlu0 %385, %v282
        %v387 = vpop.permute.xlu0 %386
        %390 = vset.pattern.permute.xlu0 0
        %391 = vperm.xlu0 %390, %v283
        %v392 = vpop.permute.xlu0 %391
        %395 = vset.pattern.permute.xlu0 0
        %396 = vperm.xlu0 %395, %v284
        %v397 = vpop.permute.xlu0 %396
        %400 = vset.pattern.permute.xlu0 0
        %401 = vperm.xlu0 %400, %v285
        %v402 = vpop.permute.xlu0 %401
        %405 = vset.pattern.permute.xlu0 0
        %406 = vperm.xlu0 %405, %v286
        %v407 = vpop.permute.xlu0 %406
        %410 = vset.pattern.permute.xlu0 0
        %411 = vperm.xlu0 %410, %v287
        %v412 = vpop.permute.xlu0 %411
        %415 = vset.pattern.permute.xlu0 0
        %416 = vperm.xlu0 %415, %v288
        %v417 = vpop.permute.xlu0 %416
        %420 = vset.pattern.permute.xlu0 0
        %421 = vperm.xlu0 %420, %v289
        %v422 = vpop.permute.xlu0 %421
        %425 = vset.pattern.permute.xlu0 0
        %426 = vperm.xlu0 %425, %v290
        %v427 = vpop.permute.xlu0 %426
        %430 = vset.pattern.permute.xlu0 0
        %431 = vperm.xlu0 %430, %v291
        %v432 = vpop.permute.xlu0 %431
        %435 = vset.pattern.permute.xlu0 0
        %436 = vperm.xlu0 %435, %v292
        %v437 = vpop.permute.xlu0 %436
        %440 = vset.pattern.permute.xlu0 0
        %441 = vperm.xlu0 %440, %v293
        %v442 = vpop.permute.xlu0 %441
        %445 = vset.pattern.permute.xlu0 0
        %446 = vperm.xlu0 %445, %v294
        %v447 = vpop.permute.xlu0 %446
        %450 = vset.pattern.permute.xlu0 0
        %451 = vperm.xlu0 %450, %v295
        %v452 = vpop.permute.xlu0 %451
        %455 = vset.pattern.permute.xlu0 0
        %456 = vperm.xlu0 %455, %v296
        %v457 = vpop.permute.xlu0 %456
        %460 = vset.pattern.permute.xlu0 0
        %461 = vperm.xlu0 %460, %v297
        %v462 = vpop.permute.xlu0 %461
        %465 = vset.pattern.permute.xlu0 0
        %466 = vperm.xlu0 %465, %v298
        %v467 = vpop.permute.xlu0 %466
        %470 = vset.pattern.permute.xlu0 0
        %471 = vperm.xlu0 %470, %v299
        %v472 = vpop.permute.xlu0 %471
        %475 = vset.pattern.permute.xlu0 0
        %476 = vperm.xlu0 %475, %v300
        %v477 = vpop.permute.xlu0 %476
        %vm479 = vcmask 64512
        %v481 = vsel %vm479, %v329, 0
        %v484 = vsel %vm479, %v330, 0
        %v487 = vsel %vm479, %v331, 0
        %v490 = vsel %vm479, %v332, 0
        %v493 = vsel %vm479, %v333, 0
        %v496 = vsel %vm479, %v334, 0
        %v499 = vsel %vm479, %v335, 0
        %v502 = vsel %vm479, %v336, 0
        %v505 = vsel %vm479, %v337, 0
        %v508 = vsel %vm479, %v338, 0
        %v511 = vsel %vm479, %v339, 0
        %v514 = vsel %vm479, %v340, 0
        %v517 = vsel %vm479, %v341, 0
        %v520 = vsel %vm479, %v342, 0
        %v523 = vsel %vm479, %v343, 0
        %v526 = vsel %vm479, %v344, 0
        %v529 = vsel %vm479, %v345, 0
        %v532 = vsel %vm479, %v346, 0
        %v535 = vsel %vm479, %v347, 0
        %v538 = vsel %vm479, %v348, 0
        %v541 = vsel %vm479, %v349, 0
        %v544 = vsel %vm479, %v350, 0
        %v547 = vsel %vm479, %v351, 0
        %v550 = vsel %vm479, %v352, 0
        %v553 = vsel %vm479, %v353, 0
        %555 = vmatprep.subr.mxu0 0.0
        %556 = vmatpush1.msra.mxu0 %v328
        %557 = vmatprep.subr.mxu0 0.0
        %558 = vmatpush1.msra.mxu0 0.0
        %559 = vmatprep.subr.mxu0 0.0
        %560 = vmatpush1.msra.mxu0 0.0
        %561 = vmatprep.subr.mxu0 0.0
        %562 = vmatpush1.msra.mxu0 0.0
        %563 = vmatprep.subr.mxu0 0.0
        %564 = vmatpush1.msra.mxu0 0.0
        %565 = vmatprep.subr.mxu0 0.0
        %566 = vmatpush1.msra.mxu0 0.0
        %567 = vmatprep.subr.mxu0 0.0
        %568 = vmatpush1.msra.mxu0 0.0
        %569 = vmatprep.subr.mxu0 0.0
        %570 = vmatpush1.msra.mxu0 0.0
        %571 = vmatprep.subr.mxu0 0.0
        %572 = vmatpush1.msra.mxu0 0.0
        %573 = vmatprep.subr.mxu0 0.0
        %574 = vmatpush1.msra.mxu0 0.0
        %575 = vmatprep.subr.mxu0 0.0
        %576 = vmatpush1.msra.mxu0 0.0
        %577 = vmatprep.subr.mxu0 0.0
        %578 = vmatpush1.msra.mxu0 0.0
        %579 = vmatprep.subr.mxu0 0.0
        %580 = vmatpush1.msra.mxu0 0.0
        %581 = vmatprep.subr.mxu0 0.0
        %582 = vmatpush1.msra.mxu0 0.0
        %583 = vmatprep.subr.mxu0 0.0
        %584 = vmatpush1.msra.mxu0 0.0
        %585 = vmatprep.subr.mxu0 0.0
        %586 = vmatpush1.msra.mxu0 0.0
        %587 = vmatprep.subr.mxu0 0.0
        %588 = vmatpush1.msra.mxu0 0.0
        %589 = vmatprep.subr.mxu0 0.0
        %590 = vmatpush1.msra.mxu0 0.0
        %591 = vmatprep.subr.mxu0 0.0
        %592 = vmatpush1.msra.mxu0 0.0
        %593 = vmatprep.subr.mxu0 0.0
        %594 = vmatpush1.msra.mxu0 0.0
        %595 = vmatprep.subr.mxu0 0.0
        %596 = vmatpush1.msra.mxu0 0.0
        %597 = vmatprep.subr.mxu0 0.0
        %598 = vmatpush1.msra.mxu0 0.0
        %599 = vmatprep.subr.mxu0 0.0
        %600 = vmatpush1.msra.mxu0 0.0
        %601 = vmatprep.subr.mxu0 0.0
        %602 = vmatpush1.msra.mxu0 0.0
        %603 = vmatprep.subr.mxu0 0.0
        %604 = vmatpush1.msra.mxu0 0.0
        %605 = vmatprep.subr.mxu0 0.0
        %606 = vmatpush1.msra.mxu0 0.0
        %607 = vmatprep.subr.mxu0 0.0
        %608 = vmatpush1.msra.mxu0 0.0
        %609 = vmatprep.subr.mxu0 0.0
        %610 = vmatpush1.msra.mxu0 0.0
        %611 = vmatprep.subr.mxu0 0.0
        %612 = vmatpush1.msra.mxu0 0.0
        %613 = vmatprep.subr.mxu0 0.0
        %614 = vmatpush1.msra.mxu0 0.0
        %615 = vmatprep.subr.mxu0 0.0
        %616 = vmatpush1.msra.mxu0 0.0
        %617 = vmatprep.subr.mxu0 0.0
        %618 = vmatpush1.msra.mxu0 0.0
        %619 = vmatprep.mubr.f32.mxu0 0.0
        %620 = vmatmul.mubr.f32.gmra.mrb[0].mxu0 %v481
        %v621 = vpop.f32.mrb[0].mxu0
        %v622 = vadd.f32 %v357, %v621
        %v623 = vpop.f32.mrb[0].mxu0
        %624 = vmatprep.mubr.f32.mxu0 0.0
        %625 = vmatmul.mubr.f32.gmra.mrb[0].mxu0 %v484
        %v626 = vpop.f32.mrb[0].mxu0
        %v627 = vadd.f32 %v362, %v626
        %v628 = vpop.f32.mrb[0].mxu0
        %629 = vmatprep.mubr.f32.mxu0 0.0
        %630 = vmatmul.mubr.f32.gmra.mrb[0].mxu0 %v487
        %v631 = vpop.f32.mrb[0].mxu0
        %v632 = vadd.f32 %v367, %v631
        %v633 = vpop.f32.mrb[0].mxu0
        %634 = vmatprep.mubr.f32.mxu0 0.0
        %635 = vmatmul.mubr.f32.gmra.mrb[0].mxu0 %v490
        %v636 = vpop.f32.mrb[0].mxu0
        %v637 = vadd.f32 %v372, %v636
        %v638 = vpop.f32.mrb[0].mxu0
        %639 = vmatprep.mubr.f32.mxu0 0.0
        %640 = vmatmul.mubr.f32.gmra.mrb[0].mxu0 %v493
        %v641 = vpop.f32.mrb[0].mxu0
        %v642 = vadd.f32 %v377, %v641
        %v643 = vpop.f32.mrb[0].mxu0
        %644 = vmatprep.mubr.f32.mxu0 0.0
        %645 = vmatmul.mubr.f32.gmra.mrb[0].mxu0 %v496
        %v646 = vpop.f32.mrb[0].mxu0
        %v647 = vadd.f32 %v382, %v646
        %v648 = vpop.f32.mrb[0].mxu0
        %649 = vmatprep.mubr.f32.mxu0 0.0
        %650 = vmatmul.mubr.f32.gmra.mrb[0].mxu0 %v499
        %v651 = vpop.f32.mrb[0].mxu0
        %v652 = vadd.f32 %v387, %v651
        %v653 = vpop.f32.mrb[0].mxu0
        %654 = vmatprep.mubr.f32.mxu0 0.0
        %655 = vmatmul.mubr.f32.gmra.mrb[0].mxu0 %v502
        %v656 = vpop.f32.mrb[0].mxu0
        %v657 = vadd.f32 %v392, %v656
        %v658 = vpop.f32.mrb[0].mxu0
        %659 = vmatprep.mubr.f32.mxu0 0.0
        %660 = vmatmul.mubr.f32.gmra.mrb[0].mxu0 %v505
        %v661 = vpop.f32.mrb[0].mxu0
        %v662 = vadd.f32 %v397, %v661
        %v663 = vpop.f32.mrb[0].mxu0
        %664 = vmatprep.mubr.f32.mxu0 0.0
        %665 = vmatmul.mubr.f32.gmra.mrb[0].mxu0 %v508
        %v666 = vpop.f32.mrb[0].mxu0
        %v667 = vadd.f32 %v402, %v666
        %v668 = vpop.f32.mrb[0].mxu0
        %669 = vmatprep.mubr.f32.mxu0 0.0
        %670 = vmatmul.mubr.f32.gmra.mrb[0].mxu0 %v511
        %v671 = vpop.f32.mrb[0].mxu0
        %v672 = vadd.f32 %v407, %v671
        %v673 = vpop.f32.mrb[0].mxu0
        %674 = vmatprep.mubr.f32.mxu0 0.0
        %675 = vmatmul.mubr.f32.gmra.mrb[0].mxu0 %v514
        %v676 = vpop.f32.mrb[0].mxu0
        %v677 = vadd.f32 %v412, %v676
        %v678 = vpop.f32.mrb[0].mxu0
        %679 = vmatprep.mubr.f32.mxu0 0.0
        %680 = vmatmul.mubr.f32.gmra.mrb[0].mxu0 %v517
        %v681 = vpop.f32.mrb[0].mxu0
        %v682 = vadd.f32 %v417, %v681
        %v683 = vpop.f32.mrb[0].mxu0
        %684 = vmatprep.mubr.f32.mxu0 0.0
        %685 = vmatmul.mubr.f32.gmra.mrb[0].mxu0 %v520
        %v686 = vpop.f32.mrb[0].mxu0
        %v687 = vadd.f32 %v422, %v686
        %v688 = vpop.f32.mrb[0].mxu0
        %689 = vmatprep.mubr.f32.mxu0 0.0
        %690 = vmatmul.mubr.f32.gmra.mrb[0].mxu0 %v523
        %v691 = vpop.f32.mrb[0].mxu0
        %v692 = vadd.f32 %v427, %v691
        %v693 = vpop.f32.mrb[0].mxu0
        %694 = vmatprep.mubr.f32.mxu0 0.0
        %695 = vmatmul.mubr.f32.gmra.mrb[0].mxu0 %v526
        %v696 = vpop.f32.mrb[0].mxu0
        %v697 = vadd.f32 %v432, %v696
        %v698 = vpop.f32.mrb[0].mxu0
        %699 = vmatprep.mubr.f32.mxu0 0.0
        %700 = vmatmul.mubr.f32.gmra.mrb[0].mxu0 %v529
        %v701 = vpop.f32.mrb[0].mxu0
        %v702 = vadd.f32 %v437, %v701
        %v703 = vpop.f32.mrb[0].mxu0
        %704 = vmatprep.mubr.f32.mxu0 0.0
        %705 = vmatmul.mubr.f32.gmra.mrb[0].mxu0 %v532
        %v706 = vpop.f32.mrb[0].mxu0
        %v707 = vadd.f32 %v442, %v706
        %v708 = vpop.f32.mrb[0].mxu0
        %709 = vmatprep.mubr.f32.mxu0 0.0
        %710 = vmatmul.mubr.f32.gmra.mrb[0].mxu0 %v535
        %v711 = vpop.f32.mrb[0].mxu0
        %v712 = vadd.f32 %v447, %v711
        %v713 = vpop.f32.mrb[0].mxu0
        %714 = vmatprep.mubr.f32.mxu0 0.0
        %715 = vmatmul.mubr.f32.gmra.mrb[0].mxu0 %v538
        %v716 = vpop.f32.mrb[0].mxu0
        %v717 = vadd.f32 %v452, %v716
        %v718 = vpop.f32.mrb[0].mxu0
        %719 = vmatprep.mubr.f32.mxu0 0.0
        %720 = vmatmul.mubr.f32.gmra.mrb[0].mxu0 %v541
        %v721 = vpop.f32.mrb[0].mxu0
        %v722 = vadd.f32 %v457, %v721
        %v723 = vpop.f32.mrb[0].mxu0
        %724 = vmatprep.mubr.f32.mxu0 0.0
        %725 = vmatmul.mubr.f32.gmra.mrb[0].mxu0 %v544
        %v726 = vpop.f32.mrb[0].mxu0
        %v727 = vadd.f32 %v462, %v726
        %v728 = vpop.f32.mrb[0].mxu0
        %729 = vmatprep.mubr.f32.mxu0 0.0
        %730 = vmatmul.mubr.f32.gmra.mrb[0].mxu0 %v547
        %v731 = vpop.f32.mrb[0].mxu0
        %v732 = vadd.f32 %v467, %v731
        %v733 = vpop.f32.mrb[0].mxu0
        %734 = vmatprep.mubr.f32.mxu0 0.0
        %735 = vmatmul.mubr.f32.gmra.mrb[0].mxu0 %v550
        %v736 = vpop.f32.mrb[0].mxu0
        %v737 = vadd.f32 %v472, %v736
        %v738 = vpop.f32.mrb[0].mxu0
        %739 = vmatprep.mubr.f32.mxu0 0.0
        %740 = vmatmul.mubr.f32.gmra.mrb[0].mxu0 %v553
        %v741 = vpop.f32.mrb[0].mxu0
        %v742 = vadd.f32 %v477, %v741
        %v743 = vpop.f32.mrb[0].mxu0
        %744 = vdwg.mxu0
        %v745 = vmul.f32 %v622, 0.5
        %v746 = vmul.f32 %v627, 0.5
        %v747 = vmul.f32 %v632, 0.5
        %v748 = vmul.f32 %v637, 0.5
        %v749 = vmul.f32 %v642, 0.5
        %v750 = vmul.f32 %v647, 0.5
        %v751 = vmul.f32 %v652, 0.5
        %v752 = vmul.f32 %v657, 0.5
        %v753 = vmul.f32 %v662, 0.5
        %v754 = vmul.f32 %v667, 0.5
        %v755 = vmul.f32 %v672, 0.5
        %v756 = vmul.f32 %v677, 0.5
        %v757 = vmul.f32 %v682, 0.5
        %v758 = vmul.f32 %v687, 0.5
        %v759 = vmul.f32 %v692, 0.5
        %v760 = vmul.f32 %v697, 0.5
        %v761 = vmul.f32 %v702, 0.5
        %v762 = vmul.f32 %v707, 0.5
        %v763 = vmul.f32 %v712, 0.5
        %v764 = vmul.f32 %v717, 0.5
        %v765 = vmul.f32 %v722, 0.5
        %v766 = vmul.f32 %v727, 0.5
        %v767 = vmul.f32 %v732, 0.5
        %v768 = vmul.f32 %v737, 0.5
        %v769 = vmul.f32 %v742, 0.5
        %v770 = vmul.f32 %v622, 0.70710677
        %v771 = vmul.f32 %v627, 0.70710677
        %v772 = vmul.f32 %v632, 0.70710677
        %v773 = vmul.f32 %v637, 0.70710677
        %v774 = vmul.f32 %v642, 0.70710677
        %v775 = vmul.f32 %v647, 0.70710677
        %v776 = vmul.f32 %v652, 0.70710677
        %v777 = vmul.f32 %v657, 0.70710677
        %v778 = vmul.f32 %v662, 0.70710677
        %v779 = vmul.f32 %v667, 0.70710677
        %v780 = vmul.f32 %v672, 0.70710677
        %v781 = vmul.f32 %v677, 0.70710677
        %v782 = vmul.f32 %v682, 0.70710677
        %v783 = vmul.f32 %v687, 0.70710677
        %v784 = vmul.f32 %v692, 0.70710677
        %v785 = vmul.f32 %v697, 0.70710677
        %v786 = vmul.f32 %v702, 0.70710677
        %v787 = vmul.f32 %v707, 0.70710677
        %v788 = vmul.f32 %v712, 0.70710677
        %v789 = vmul.f32 %v717, 0.70710677
        %v790 = vmul.f32 %v722, 0.70710677
        %v791 = vmul.f32 %v727, 0.70710677
        %v792 = vmul.f32 %v732, 0.70710677
        %v793 = vmul.f32 %v737, 0.70710677
        %v794 = vmul.f32 %v742, 0.70710677
        %v795 = verf.f32.pop %v770
        %v796 = verf.f32.pop %v771
        %v797 = verf.f32.pop %v772
        %v798 = verf.f32.pop %v773
        %v799 = verf.f32.pop %v774
        %v800 = verf.f32.pop %v775
        %v801 = verf.f32.pop %v776
        %v802 = verf.f32.pop %v777
        %v803 = verf.f32.pop %v778
        %v804 = verf.f32.pop %v779
        %v805 = verf.f32.pop %v780
        %v806 = verf.f32.pop %v781
        %v807 = verf.f32.pop %v782
        %v808 = verf.f32.pop %v783
        %v809 = verf.f32.pop %v784
        %v810 = verf.f32.pop %v785
        %v811 = verf.f32.pop %v786
        %v812 = verf.f32.pop %v787
        %v813 = verf.f32.pop %v788
        %v814 = verf.f32.pop %v789
        %v815 = verf.f32.pop %v790
        %v816 = verf.f32.pop %v791
        %v817 = verf.f32.pop %v792
        %v818 = verf.f32.pop %v793
        %v819 = verf.f32.pop %v794
        %v820 = vadd.f32 %v795, 1.0
        %v821 = vadd.f32 %v796, 1.0
        %v822 = vadd.f32 %v797, 1.0
        %v823 = vadd.f32 %v798, 1.0
        %v824 = vadd.f32 %v799, 1.0
        %v825 = vadd.f32 %v800, 1.0
        %v826 = vadd.f32 %v801, 1.0
        %v827 = vadd.f32 %v802, 1.0
        %v828 = vadd.f32 %v803, 1.0
        %v829 = vadd.f32 %v804, 1.0
        %v830 = vadd.f32 %v805, 1.0
        %v831 = vadd.f32 %v806, 1.0
        %v832 = vadd.f32 %v807, 1.0
        %v833 = vadd.f32 %v808, 1.0
        %v834 = vadd.f32 %v809, 1.0
        %v835 = vadd.f32 %v810, 1.0
        %v836 = vadd.f32 %v811, 1.0
        %v837 = vadd.f32 %v812, 1.0
        %v838 = vadd.f32 %v813, 1.0
        %v839 = vadd.f32 %v814, 1.0
        %v840 = vadd.f32 %v815, 1.0
        %v841 = vadd.f32 %v816, 1.0
        %v842 = vadd.f32 %v817, 1.0
        %v843 = vadd.f32 %v818, 1.0
        %v844 = vadd.f32 %v819, 1.0
        %v845 = vmul.f32 %v745, %v820
        %v846 = vmul.f32 %v746, %v821
        %v847 = vmul.f32 %v747, %v822
        %v848 = vmul.f32 %v748, %v823
        %v849 = vmul.f32 %v749, %v824
        %v850 = vmul.f32 %v750, %v825
        %v851 = vmul.f32 %v751, %v826
        %v852 = vmul.f32 %v752, %v827
        %v853 = vmul.f32 %v753, %v828
        %v854 = vmul.f32 %v754, %v829
        %v855 = vmul.f32 %v755, %v830
        %v856 = vmul.f32 %v756, %v831
        %v857 = vmul.f32 %v757, %v832
        %v858 = vmul.f32 %v758, %v833
        %v859 = vmul.f32 %v759, %v834
        %v860 = vmul.f32 %v760, %v835
        %v861 = vmul.f32 %v761, %v836
        %v862 = vmul.f32 %v762, %v837
        %v863 = vmul.f32 %v763, %v838
        %v864 = vmul.f32 %v764, %v839
        %v865 = vmul.f32 %v765, %v840
        %v866 = vmul.f32 %v766, %v841
        %v867 = vmul.f32 %v767, %v842
        %v868 = vmul.f32 %v768, %v843
        %v869 = vmul.f32 %v769, %v844
        %v870 = vld [vmem:[%s5] sm:$0xff]
        %v871 = vld [vmem:[%s5 + $0x8] sm:$0xff]
        %873 = vset.pattern.permute.xlu0 0
        %874 = vperm.xlu0 %873, %v301
        %v875 = vpop.permute.xlu0 %874
        %vm877 = vcmask 588800
        %v879 = vsel %vm877, %v871, 0
        %881 = vmatprep.subr.mxu0 0.0
        %882 = vmatpush1.msra.mxu0 %v845
        %883 = vmatprep.subr.mxu0 0.0
        %884 = vmatpush1.msra.mxu0 %v846
        %885 = vmatprep.subr.mxu0 0.0
        %886 = vmatpush1.msra.mxu0 %v847
        %887 = vmatprep.subr.mxu0 0.0
        %888 = vmatpush1.msra.mxu0 %v848
        %889 = vmatprep.subr.mxu0 0.0
        %890 = vmatpush1.msra.mxu0 %v849
        %891 = vmatprep.subr.mxu0 0.0
        %892 = vmatpush1.msra.mxu0 %v850
        %893 = vmatprep.subr.mxu0 0.0
        %894 = vmatpush1.msra.mxu0 %v851
        %895 = vmatprep.subr.mxu0 0.0
        %896 = vmatpush1.msra.mxu0 %v852
        %897 = vmatprep.subr.mxu0 0.0
        %898 = vmatpush1.msra.mxu0 %v853
        %899 = vmatprep.subr.mxu0 0.0
        %900 = vmatpush1.msra.mxu0 %v854
        %901 = vmatprep.subr.mxu0 0.0
        %902 = vmatpush1.msra.mxu0 %v855
        %903 = vmatprep.subr.mxu0 0.0
        %904 = vmatpush1.msra.mxu0 %v856
        %905 = vmatprep.subr.mxu0 0.0
        %906 = vmatpush1.msra.mxu0 %v857
        %907 = vmatprep.subr.mxu0 0.0
        %908 = vmatpush1.msra.mxu0 %v858
        %909 = vmatprep.subr.mxu0 0.0
        %910 = vmatpush1.msra.mxu0 %v859
        %911 = vmatprep.subr.mxu0 0.0
        %912 = vmatpush1.msra.mxu0 %v860
        %913 = vmatprep.subr.mxu0 0.0
        %914 = vmatpush1.msra.mxu0 %v861
        %915 = vmatprep.subr.mxu0 0.0
        %916 = vmatpush1.msra.mxu0 %v862
        %917 = vmatprep.subr.mxu0 0.0
        %918 = vmatpush1.msra.mxu0 %v863
        %919 = vmatprep.subr.mxu0 0.0
        %920 = vmatpush1.msra.mxu0 %v864
        %921 = vmatprep.subr.mxu0 0.0
        %922 = vmatpush1.msra.mxu0 %v865
        %923 = vmatprep.subr.mxu0 0.0
        %924 = vmatpush1.msra.mxu0 %v866
        %925 = vmatprep.subr.mxu0 0.0
        %926 = vmatpush1.msra.mxu0 %v867
        %927 = vmatprep.subr.mxu0 0.0
        %928 = vmatpush1.msra.mxu0 %v868
        %929 = vmatprep.subr.mxu0 0.0
        %930 = vmatpush1.msra.mxu0 %v869
        %931 = vmatprep.subr.mxu0 0.0
        %932 = vmatpush1.msra.mxu0 0.0
        %933 = vmatprep.subr.mxu0 0.0
        %934 = vmatpush1.msra.mxu0 0.0
        %935 = vmatprep.subr.mxu0 0.0
        %936 = vmatpush1.msra.mxu0 0.0
        %937 = vmatprep.subr.mxu0 0.0
        %938 = vmatpush1.msra.mxu0 0.0
        %939 = vmatprep.subr.mxu0 0.0
        %940 = vmatpush1.msra.mxu0 0.0
        %941 = vmatprep.subr.mxu0 0.0
        %942 = vmatpush1.msra.mxu0 0.0
        %943 = vmatprep.subr.mxu0 0.0
        %944 = vmatpush1.msra.mxu0 0.0
        %945 = vmatprep.mubr.f32.mxu0 %v879
        %946 = vmatmul.mubr.f32.gmra.mrb[0].mxu0 %v870
        %v947 = vpop.f32.mrb[0].mxu0
        %v948 = vadd.f32 %v875, %v947
        %v949 = vpop.f32.mrb[0].mxu0
        %950 = vdwg.mxu0
        %v951 = vadd.f32 %v948, %v302
        %952 = vst [vmem:[%s269] sm:$0xff] %v951
        %s953 = sand.u32 %s181, 1
        %s954 = scalar_lea.sflag [#allocation3], %s953
        %s955 = sand.u32 %s181, 1
        %s956 = smul.addr %s955, 8
        %s957 = scalar_lea.vmem [#allocation2], %s956
        // Predicated region
        $region49: #{tpu_custom_call.1} parent=47 // pred_check
          %p958 = pneg %p191
        $region50: #{tpu_custom_call.1} parent=47 // pred_check_branch
          %960 = sbr.rel (%p958) target = $region52
        $region51: #{tpu_custom_call.1} parent=47 // pred_region
          %s962 = ssub.s32 128, 128
          %963 = vsyncadd %s954, %s962
          %s964 = smul.addr %s21, 128
          %s965 = scalar_lea.hbm %s7, %s964
          %s967 = sshll.u32 %s957, 4
          %s968 = int_to_ptr.vmem [resolvable:$true] %s967
          %970 = dma.vmem_to_hbm [thread:$0]  %s968, 128, %s965, %s954
        $region52: #{tpu_custom_call.1} parent=47 // pred_fallthru
          _
      $region48: #{tpu_custom_call.1} parent=5 // pred_fallthru
        _
      %p971 = scmp.le.s32.totalorder 2, %s16
      // Predicated region
      $region53: #{tpu_custom_call.1} parent=5 // pred_check
        %p972 = pneg %p971
      $region54: #{tpu_custom_call.1} parent=5 // pred_check_branch
        %974 = sbr.rel (%p972) target = $region56
      $region55: #{tpu_custom_call.1} parent=5 // pred_region
        %s975 = ssub.s32 %s16, 2
        // Predicated region
        $region57: #{tpu_custom_call.1} parent=55 // pred_check
          %p976 = pneg %p197
        $region58: #{tpu_custom_call.1} parent=55 // pred_check_branch
          %978 = sbr.rel (%p976) target = $region60
        $region59: #{tpu_custom_call.1} parent=55 // pred_region
          %s979 = sand.u32 %s182, 1
          %s980 = scalar_lea.sflag [#allocation3], %s979
          %s981 = sand.u32 %s182, 1
          %s982 = smul.addr %s981, 8
          %s983 = scalar_lea.vmem [#allocation2], %s982
          %984 = dma.done %s980, 128
        $region60: #{tpu_custom_call.1} parent=55 // pred_fallthru
          _
      $region56: #{tpu_custom_call.1} parent=5 // pred_fallthru
        _
    $region6: #{tpu_custom_call.1} parent=1 // loop_footer
      %s20 = sadd.s32 1, %s16
    $region7: #{tpu_custom_call.1} parent=1 // loop_footer_branch
      %15 = sbr.rel target = $region3
    $region8: #{tpu_custom_call.1} parent=1 // loop_exit
      _
    %985 = vsyncpa [#allocation3], 1
    %s986 = scalar_lea.sflag [#allocation3], 1
    %987 = vsyncpa %s986, 1

// kernel: tpu_custom_call.1
$region0: #{tpu_custom_call.1}
  #allocation0 [shape = 'u32[]', space=smem, size = 0x4, offset = 0x4, fixed_abs, tag = 'smem constant byte address 0x4 - core index']
  #allocation1 [shape = 'u32[144,128]{1,0:T(1,128)}', space=vmem, size = 0x12000, scoped, tag = 'internal scratch']
  %s0 = inlined_call_operand.vmem [shape: f32[2,8,128], index: 0, kind: input, shape index: {}]
  %s1 = inlined_call_operand.vmem [shape: f32[8,1], index: 1, kind: input, shape index: {}]
  %s2 = inlined_call_operand.vmem [shape: f32[8,1], index: 2, kind: input, shape index: {}]
  %s3 = inlined_call_operand.vmem [shape: f32[200,8], index: 3, kind: input, shape index: {}]
  %s4 = inlined_call_operand.vmem [shape: f32[200,1], index: 4, kind: input, shape index: {}]
  %s5 = inlined_call_operand.vmem [shape: f32[8,200], index: 5, kind: input, shape index: {}]
  %s6 = inlined_call_operand.vmem [shape: f32[8,1], index: 6, kind: input, shape index: {}]
  %s7 = inlined_call_operand.hbm [shape: f32[2,8,128], index: 7, kind: output, shape index: {}]
  %s8 = sld [smem:[#allocation0]]
  $region61: #{tpu_custom_call.1} parent=0
    _
  %s10 = ssub.s32 1, %s8
  %s11 = scalar_select 0, %s10, %s8
  $region1: #{tpu_custom_call.1} parent=0
    #allocation2 [shape = 'u8[8192]{0}', space=vmem, size = 0x2000, scoped, tag = 'output window, operand 0']
    #allocation3 [shape = 's32[2]{0}', space=sflag, size = 0x8, scoped, tag = 'scoped memory for tpu_custom_call.1']
    %12 = vsyncpa [#allocation3], 0
    %s13 = scalar_lea.sflag [#allocation3], 1
    %14 = vsyncpa %s13, 0
    loop: start=0, step=1, limit=4
    $region2: #{tpu_custom_call.1} parent=1 // loop_pre_header
      _
    $region3: #{tpu_custom_call.1} parent=1 // loop_header
      %s16 = sphi 0, %s20
      %p17 = scmp.ge.s32.totalorder %s16, 4
      %s26 = sphi 0, %s28
      %s29 = sphi 0, %s26
      %s30 = sphi 0, %s29
      %s46 = sphi 0, %s30
      %s50 = sphi 0, %s50
      %s52 = sphi 0, %s50
      %s53 = sphi 0, %s52
      %s67 = sphi 0, %s53
      %s71 = sphi 0, %s71
      %s73 = sphi 0, %s71
      %s74 = sphi 0, %s73
      %s88 = sphi 0, %s74
      %s92 = sphi 0, %s92
      %s94 = sphi 0, %s92
      %s95 = sphi 0, %s94
      %s109 = sphi 0, %s95
      %s113 = sphi 0, %s113
      %s115 = sphi 0, %s113
      %s116 = sphi 0, %s115
      %s130 = sphi 0, %s116
      %s134 = sphi 0, %s134
      %s136 = sphi 0, %s134
      %s137 = sphi 0, %s136
      %s151 = sphi 0, %s137
      %s155 = sphi 0, %s155
      %s157 = sphi 0, %s155
      %s158 = sphi 0, %s157
      %s172 = sphi 0, %s158
      %s178 = sphi 0, %s180
      %s181 = sphi 0, %s178
      %s182 = sphi 0, %s181
      %s198 = sphi 0, %s182
    $region4: #{tpu_custom_call.1} parent=1 // loop_header_branch
      %19 = sbr.rel (%p17) target = $region8
    $region5: #{tpu_custom_call.1} parent=1 // loop_body
      %s21 = ssub.s32 %s16, 1
      %s22 = ssub.s32 %s16, 2
      %s23 = sadd.s32 %s16, 1
      %s24 = ssub.s32 %s16, %s23
      %p25 = scmp.eq.s32.totalorder %s24, 0
      %s27 = sadd.s32 %s26, 1
      %s28 = scalar_select %p25, %s26, %s27
      %p31 = pneg %p25
      %p32 = scmp.eq.s32.totalorder %s16, 1
      %p33 = por %p31, %p32
      %p34 = scmp.ne.s32.totalorder %s26, %s29
      %p35 = scmp.eq.s32.totalorder %s16, 0
      %p36 = por %p34, %p35
      %p37 = scmp.ne.s32.totalorder %s26, %s29
      %p38 = scmp.eq.s32.totalorder %s21, 1
      %p39 = por %p37, %p38
      %p40 = scmp.ne.s32.totalorder %s29, %s30
      %p41 = scmp.eq.s32.totalorder %s21, 0
      %p42 = por %p40, %p41
      %p43 = scmp.ne.s32.totalorder %s29, %s30
      %p44 = scmp.eq.s32.totalorder %s22, 1
      %p45 = por %p43, %p44
      %p47 = scmp.ne.s32.totalorder %s30, %s46
      %p48 = scmp.eq.s32.totalorder %s22, 0
      %p49 = por %p47, %p48
      %s51 = sadd.s32 %s50, 1
      %p54 = scmp.eq.s32.totalorder %s16, 1
      %p55 = scmp.ne.s32.totalorder %s50, %s52
      %p56 = scmp.eq.s32.totalorder %s16, 0
      %p57 = por %p55, %p56
      %p58 = scmp.ne.s32.totalorder %s50, %s52
      %p59 = scmp.eq.s32.totalorder %s21, 1
      %p60 = por %p58, %p59
      %p61 = scmp.ne.s32.totalorder %s52, %s53
      %p62 = scmp.eq.s32.totalorder %s21, 0
      %p63 = por %p61, %p62
      %p64 = scmp.ne.s32.totalorder %s52, %s53
      %p65 = scmp.eq.s32.totalorder %s22, 1
      %p66 = por %p64, %p65
      %p68 = scmp.ne.s32.totalorder %s53, %s67
      %p69 = scmp.eq.s32.totalorder %s22, 0
      %p70 = por %p68, %p69
      %s72 = sadd.s32 %s71, 1
      %p75 = scmp.eq.s32.totalorder %s16, 1
      %p76 = scmp.ne.s32.totalorder %s71, %s73
      %p77 = scmp.eq.s32.totalorder %s16, 0
      %p78 = por %p76, %p77
      %p79 = scmp.ne.s32.totalorder %s71, %s73
      %p80 = scmp.eq.s32.totalorder %s21, 1
      %p81 = por %p79, %p80
      %p82 = scmp.ne.s32.totalorder %s73, %s74
      %p83 = scmp.eq.s32.totalorder %s21, 0
      %p84 = por %p82, %p83
      %p85 = scmp.ne.s32.totalorder %s73, %s74
      %p86 = scmp.eq.s32.totalorder %s22, 1
      %p87 = por %p85, %p86
      %p89 = scmp.ne.s32.totalorder %s74, %s88
      %p90 = scmp.eq.s32.totalorder %s22, 0
      %p91 = por %p89, %p90
      %s93 = sadd.s32 %s92, 1
      %p96 = scmp.eq.s32.totalorder %s16, 1
      %p97 = scmp.ne.s32.totalorder %s92, %s94
      %p98 = scmp.eq.s32.totalorder %s16, 0
      %p99 = por %p97, %p98
      %p100 = scmp.ne.s32.totalorder %s92, %s94
      %p101 = scmp.eq.s32.totalorder %s21, 1
      %p102 = por %p100, %p101
      %p103 = scmp.ne.s32.totalorder %s94, %s95
      %p104 = scmp.eq.s32.totalorder %s21, 0
      %p105 = por %p103, %p104
      %p106 = scmp.ne.s32.totalorder %s94, %s95
      %p107 = scmp.eq.s32.totalorder %s22, 1
      %p108 = por %p106, %p107
      %p110 = scmp.ne.s32.totalorder %s95, %s109
      %p111 = scmp.eq.s32.totalorder %s22, 0
      %p112 = por %p110, %p111
      %s114 = sadd.s32 %s113, 1
      %p117 = scmp.eq.s32.totalorder %s16, 1
      %p118 = scmp.ne.s32.totalorder %s113, %s115
      %p119 = scmp.eq.s32.totalorder %s16, 0
      %p120 = por %p118, %p119
      %p121 = scmp.ne.s32.totalorder %s113, %s115
      %p122 = scmp.eq.s32.totalorder %s21, 1
      %p123 = por %p121, %p122
      %p124 = scmp.ne.s32.totalorder %s115, %s116
      %p125 = scmp.eq.s32.totalorder %s21, 0
      %p126 = por %p124, %p125
      %p127 = scmp.ne.s32.totalorder %s115, %s116
      %p128 = scmp.eq.s32.totalorder %s22, 1
      %p129 = por %p127, %p128
      %p131 = scmp.ne.s32.totalorder %s116, %s130
      %p132 = scmp.eq.s32.totalorder %s22, 0
      %p133 = por %p131, %p132
      %s135 = sadd.s32 %s134, 1
      %p138 = scmp.eq.s32.totalorder %s16, 1
      %p139 = scmp.ne.s32.totalorder %s134, %s136
      %p140 = scmp.eq.s32.totalorder %s16, 0
      %p141 = por %p139, %p140
      %p142 = scmp.ne.s32.totalorder %s134, %s136
      %p143 = scmp.eq.s32.totalorder %s21, 1
      %p144 = por %p142, %p143
      %p145 = scmp.ne.s32.totalorder %s136, %s137
      %p146 = scmp.eq.s32.totalorder %s21, 0
      %p147 = por %p145, %p146
      %p148 = scmp.ne.s32.totalorder %s136, %s137
      %p149 = scmp.eq.s32.totalorder %s22, 1
      %p150 = por %p148, %p149
      %p152 = scmp.ne.s32.totalorder %s137, %s151
      %p153 = scmp.eq.s32.totalorder %s22, 0
      %p154 = por %p152, %p153
      %s156 = sadd.s32 %s155, 1
      %p159 = scmp.eq.s32.totalorder %s16, 1
      %p160 = scmp.ne.s32.totalorder %s155, %s157
      %p161 = scmp.eq.s32.totalorder %s16, 0
      %p162 = por %p160, %p161
      %p163 = scmp.ne.s32.totalorder %s155, %s157
      %p164 = scmp.eq.s32.totalorder %s21, 1
      %p165 = por %p163, %p164
      %p166 = scmp.ne.s32.totalorder %s157, %s158
      %p167 = scmp.eq.s32.totalorder %s21, 0
      %p168 = por %p166, %p167
      %p169 = scmp.ne.s32.totalorder %s157, %s158
      %p170 = scmp.eq.s32.totalorder %s22, 1
      %p171 = por %p169, %p170
      %p173 = scmp.ne.s32.totalorder %s158, %s172
      %p174 = scmp.eq.s32.totalorder %s22, 0
      %p175 = por %p173, %p174
      %s176 = ssub.s32 %s16, %s23
      %p177 = scmp.eq.s32.totalorder %s176, 0
      %s179 = sadd.s32 %s178, 1
      %s180 = scalar_select %p177, %s178, %s179
      %p183 = pneg %p177
      %p184 = scmp.eq.s32.totalorder %s16, 1
      %p185 = por %p183, %p184
      %p186 = scmp.ne.s32.totalorder %s178, %s181
      %p187 = scmp.eq.s32.totalorder %s16, 0
      %p188 = por %p186, %p187
      %p189 = scmp.ne.s32.totalorder %s178, %s181
      %p190 = scmp.eq.s32.totalorder %s21, 1
      %p191 = por %p189, %p190
      %p192 = scmp.ne.s32.totalorder %s181, %s182
      %p193 = scmp.eq.s32.totalorder %s21, 0
      %p194 = por %p192, %p193
      %p195 = scmp.ne.s32.totalorder %s181, %s182
      %p196 = scmp.eq.s32.totalorder %s22, 1
      %p197 = por %p195, %p196
      %p199 = scmp.ne.s32.totalorder %s182, %s198
      %p200 = scmp.eq.s32.totalorder %s22, 0
      %p201 = por %p199, %p200
      %p202 = scmp.le.s32.totalorder 1, %s16
      %p203 = scmp.lt.s32.totalorder %s16, 3
      %p204 = pnand %p202, %p203
      %p205 = pneg %p204
      // Predicated region
      $region9: #{tpu_custom_call.1} parent=5 // pred_check
        _
      $region10: #{tpu_custom_call.1} parent=5 // pred_check_branch
        %207 = sbr.rel (%p204) target = $region12
      $region11: #{tpu_custom_call.1} parent=5 // pred_region
        %s208 = ssub.s32 %s16, 1
        // Predicated region
        $region13: #{tpu_custom_call.1} parent=11 // pred_check
          %p209 = pneg %p63
        $region14: #{tpu_custom_call.1} parent=11 // pred_check_branch
          %211 = sbr.rel (%p209) target = $region16
        $region15: #{tpu_custom_call.1} parent=11 // pred_region
          _
        $region16: #{tpu_custom_call.1} parent=11 // pred_fallthru
          _
        // Predicated region
        $region17: #{tpu_custom_call.1} parent=11 // pred_check
          %p212 = pneg %p84
        $region18: #{tpu_custom_call.1} parent=11 // pred_check_branch
          %214 = sbr.rel (%p212) target = $region20
        $region19: #{tpu_custom_call.1} parent=11 // pred_region
          _
        $region20: #{tpu_custom_call.1} parent=11 // pred_fallthru
          _
        // Predicated region
        $region21: #{tpu_custom_call.1} parent=11 // pred_check
          %p215 = pneg %p105
        $region22: #{tpu_custom_call.1} parent=11 // pred_check_branch
          %217 = sbr.rel (%p215) target = $region24
        $region23: #{tpu_custom_call.1} parent=11 // pred_region
          _
        $region24: #{tpu_custom_call.1} parent=11 // pred_fallthru
          _
        // Predicated region
        $region25: #{tpu_custom_call.1} parent=11 // pred_check
          %p218 = pneg %p126
        $region26: #{tpu_custom_call.1} parent=11 // pred_check_branch
          %220 = sbr.rel (%p218) target = $region28
        $region27: #{tpu_custom_call.1} parent=11 // pred_region
          _
        $region28: #{tpu_custom_call.1} parent=11 // pred_fallthru
          _
        // Predicated region
        $region29: #{tpu_custom_call.1} parent=11 // pred_check
          %p221 = pneg %p147
        $region30: #{tpu_custom_call.1} parent=11 // pred_check_branch
          %223 = sbr.rel (%p221) target = $region32
        $region31: #{tpu_custom_call.1} parent=11 // pred_region
          _
        $region32: #{tpu_custom_call.1} parent=11 // pred_fallthru
          _
        // Predicated region
        $region33: #{tpu_custom_call.1} parent=11 // pred_check
          %p224 = pneg %p168
        $region34: #{tpu_custom_call.1} parent=11 // pred_check_branch
          %226 = sbr.rel (%p224) target = $region36
        $region35: #{tpu_custom_call.1} parent=11 // pred_region
          _
        $region36: #{tpu_custom_call.1} parent=11 // pred_fallthru
          _
      $region12: #{tpu_custom_call.1} parent=5 // pred_fallthru
        _
      %p227 = scmp.lt.s32.totalorder %s16, 2
      // Predicated region
      $region37: #{tpu_custom_call.1} parent=5 // pred_check
        %p228 = pneg %p227
      $region38: #{tpu_custom_call.1} parent=5 // pred_check_branch
        %230 = sbr.rel (%p228) target = $region40
      $region39: #{tpu_custom_call.1} parent=5 // pred_region
        // Predicated region
        $region41: #{tpu_custom_call.1} parent=39 // pred_check
          %p231 = pneg %p36
        $region42: #{tpu_custom_call.1} parent=39 // pred_check_branch
          %233 = sbr.rel (%p231) target = $region44
        $region43: #{tpu_custom_call.1} parent=39 // pred_region
          %p234 = scmp.lt.s32.totalorder %s16, 1
          %s235 = scalar_select %p234, %s16, 1
          %s236 = smul.addr %s235, 8
          %s237 = scalar_lea.vmem %s0, %s236
        $region44: #{tpu_custom_call.1} parent=39 // pred_fallthru
          _
      $region40: #{tpu_custom_call.1} parent=5 // pred_fallthru
        _
      %p238 = scmp.le.s32.totalorder 1, %s16
      %p239 = scmp.lt.s32.totalorder %s16, 3
      %p240 = pnand %p238, %p239
      %p241 = pneg %p240
      // Predicated region
      $region45: #{tpu_custom_call.1} parent=5 // pred_check
        _
      $region46: #{tpu_custom_call.1} parent=5 // pred_check_branch
        %243 = sbr.rel (%p240) target = $region48
      $region47: #{tpu_custom_call.1} parent=5 // pred_region
        %s244 = ssub.s32 %s16, 1
        %p245 = scmp.lt.s32.totalorder %s21, 1
        %s246 = scalar_select %p245, %s21, 1
        %s247 = smul.addr %s246, 8
        %s248 = scalar_lea.vmem %s0, %s247
        %p249 = pneg %p42
        %p250 = pneg %p39
        %p251 = pneg %p63
        %p252 = pneg %p60
        %p253 = pneg %p84
        %p254 = pneg %p81
        %p255 = pneg %p105
        %p256 = pneg %p102
        %p257 = pneg %p126
        %p258 = pneg %p123
        %p259 = pneg %p147
        %p260 = pneg %p144
        %p261 = pneg %p168
        %p262 = pneg %p165
        %p263 = pneg %p194
        %p264 = pneg %p191
        %s265 = sand.u32 %s181, 1
        %s266 = scalar_lea.sflag [#allocation3], %s265
        %s267 = sand.u32 %s181, 1
        %s268 = smul.addr %s267, 8
        %s269 = scalar_lea.vmem [#allocation2], %s268
        %p270 = scmp.lt.s32.totalorder %s21, 1
        %s271 = scalar_select %p270, %s21, 1
        %s272 = smul.addr %s271, 8
        %s273 = scalar_lea.vmem %s0, %s272
        %v274 = vld [vmem:[%s1] sm:$0xff]
        %v275 = vld [vmem:[%s2] sm:$0xff]
        %v276 = vld [vmem:[%s4] sm:$0xff]
        %v277 = vld [vmem:[%s4 + $0x8] sm:$0xff]
        %v278 = vld [vmem:[%s4 + $0x10] sm:$0xff]
        %v279 = vld [vmem:[%s4 + $0x18] sm:$0xff]
        %v280 = vld [vmem:[%s4 + $0x20] sm:$0xff]
        %v281 = vld [vmem:[%s4 + $0x28] sm:$0xff]
        %v282 = vld [vmem:[%s4 + $0x30] sm:$0xff]
        %v283 = vld [vmem:[%s4 + $0x38] sm:$0xff]
        %v284 = vld [vmem:[%s4 + $0x40] sm:$0xff]
        %v285 = vld [vmem:[%s4 + $0x48] sm:$0xff]
        %v286 = vld [vmem:[%s4 + $0x50] sm:$0xff]
        %v287 = vld [vmem:[%s4 + $0x58] sm:$0xff]
        %v288 = vld [vmem:[%s4 + $0x60] sm:$0xff]
        %v289 = vld [vmem:[%s4 + $0x68] sm:$0xff]
        %v290 = vld [vmem:[%s4 + $0x70] sm:$0xff]
        %v291 = vld [vmem:[%s4 + $0x78] sm:$0xff]
        %v292 = vld [vmem:[%s4 + $0x80] sm:$0xff]
        %v293 = vld [vmem:[%s4 + $0x88] sm:$0xff]
        %v294 = vld [vmem:[%s4 + $0x90] sm:$0xff]
        %v295 = vld [vmem:[%s4 + $0x98] sm:$0xff]
        %v296 = vld [vmem:[%s4 + $0xa0] sm:$0xff]
        %v297 = vld [vmem:[%s4 + $0xa8] sm:$0xff]
        %v298 = vld [vmem:[%s4 + $0xb0] sm:$0xff]
        %v299 = vld [vmem:[%s4 + $0xb8] sm:$0xff]
        %v300 = vld [vmem:[%s4 + $0xc0] sm:$0xff]
        %v301 = vld [vmem:[%s6] sm:$0xff]
        %v302 = vld [vmem:[%s273] sm:$0xff]
        %303 = vadd.xlane.f32.xlu0 %v302
        %v304 = vpop.xlane.xlu0 %303
        %v305 = vmul.f32 %v304, 0.025
        %v306 = vmul.f32 %v302, %v302
        %307 = vadd.xlane.f32.xlu0 %v306
        %v308 = vpop.xlane.xlu0 %307
        %v309 = vmul.f32 %v308, 0.025
        %v310 = vmul.f32 %v305, %v305
        %v311 = vsub.f32 %v309, %v310
        %v312 = vmax.f32 %v311, 0.0
        %v313 = vsub.f32 %v302, %v305
        %v314 = vadd.f32 %v312, 1e-05
        %v315 = vrsqrt.pop %v314
        %v316 = vmul.f32 %v313, %v315
        %318 = vset.pattern.permute.xlu0 0
        %319 = vperm.xlu0 %318, %v274
        %v320 = vpop.permute.xlu0 %319
        %v322 = vmul.f32 %v316, %v320
        %324 = vset.pattern.permute.xlu0 0
        %325 = vperm.xlu0 %324, %v275
        %v326 = vpop.permute.xlu0 %325
        %v328 = vadd.f32 %v322, %v326
        %v329 = vld [vmem:[%s3] sm:$0xff]
        %v330 = vld [vmem:[%s3 + $0x8] sm:$0xff]
        %v331 = vld [vmem:[%s3 + $0x10] sm:$0xff]
        %v332 = vld [vmem:[%s3 + $0x18] sm:$0xff]
        %v333 = vld [vmem:[%s3 + $0x20] sm:$0xff]
        %v334 = vld [vmem:[%s3 + $0x28] sm:$0xff]
        %v335 = vld [vmem:[%s3 + $0x30] sm:$0xff]
        %v336 = vld [vmem:[%s3 + $0x38] sm:$0xff]
        %v337 = vld [vmem:[%s3 + $0x40] sm:$0xff]
        %v338 = vld [vmem:[%s3 + $0x48] sm:$0xff]
        %v339 = vld [vmem:[%s3 + $0x50] sm:$0xff]
        %v340 = vld [vmem:[%s3 + $0x58] sm:$0xff]
        %v341 = vld [vmem:[%s3 + $0x60] sm:$0xff]
        %v342 = vld [vmem:[%s3 + $0x68] sm:$0xff]
        %v343 = vld [vmem:[%s3 + $0x70] sm:$0xff]
        %v344 = vld [vmem:[%s3 + $0x78] sm:$0xff]
        %v345 = vld [vmem:[%s3 + $0x80] sm:$0xff]
        %v346 = vld [vmem:[%s3 + $0x88] sm:$0xff]
        %v347 = vld [vmem:[%s3 + $0x90] sm:$0xff]
        %v348 = vld [vmem:[%s3 + $0x98] sm:$0xff]
        %v349 = vld [vmem:[%s3 + $0xa0] sm:$0xff]
        %v350 = vld [vmem:[%s3 + $0xa8] sm:$0xff]
        %v351 = vld [vmem:[%s3 + $0xb0] sm:$0xff]
        %v352 = vld [vmem:[%s3 + $0xb8] sm:$0xff]
        %v353 = vld [vmem:[%s3 + $0xc0] sm:$0xff]
        %355 = vset.pattern.permute.xlu0 0
        %356 = vperm.xlu0 %355, %v276
        %v357 = vpop.permute.xlu0 %356
        %360 = vset.pattern.permute.xlu0 0
        %361 = vperm.xlu0 %360, %v277
        %v362 = vpop.permute.xlu0 %361
        %365 = vset.pattern.permute.xlu0 0
        %366 = vperm.xlu0 %365, %v278
        %v367 = vpop.permute.xlu0 %366
        %370 = vset.pattern.permute.xlu0 0
        %371 = vperm.xlu0 %370, %v279
        %v372 = vpop.permute.xlu0 %371
        %375 = vset.pattern.permute.xlu0 0
        %376 = vperm.xlu0 %375, %v280
        %v377 = vpop.permute.xlu0 %376
        %380 = vset.pattern.permute.xlu0 0
        %381 = vperm.xlu0 %380, %v281
        %v382 = vpop.permute.xlu0 %381
        %385 = vset.pattern.permute.xlu0 0
        %386 = vperm.xlu0 %385, %v282
        %v387 = vpop.permute.xlu0 %386
        %390 = vset.pattern.permute.xlu0 0
        %391 = vperm.xlu0 %390, %v283
        %v392 = vpop.permute.xlu0 %391
        %395 = vset.pattern.permute.xlu0 0
        %396 = vperm.xlu0 %395, %v284
        %v397 = vpop.permute.xlu0 %396
        %400 = vset.pattern.permute.xlu0 0
        %401 = vperm.xlu0 %400, %v285
        %v402 = vpop.permute.xlu0 %401
        %405 = vset.pattern.permute.xlu0 0
        %406 = vperm.xlu0 %405, %v286
        %v407 = vpop.permute.xlu0 %406
        %410 = vset.pattern.permute.xlu0 0
        %411 = vperm.xlu0 %410, %v287
        %v412 = vpop.permute.xlu0 %411
        %415 = vset.pattern.permute.xlu0 0
        %416 = vperm.xlu0 %415, %v288
        %v417 = vpop.permute.xlu0 %416
        %420 = vset.pattern.permute.xlu0 0
        %421 = vperm.xlu0 %420, %v289
        %v422 = vpop.permute.xlu0 %421
        %425 = vset.pattern.permute.xlu0 0
        %426 = vperm.xlu0 %425, %v290
        %v427 = vpop.permute.xlu0 %426
        %430 = vset.pattern.permute.xlu0 0
        %431 = vperm.xlu0 %430, %v291
        %v432 = vpop.permute.xlu0 %431
        %435 = vset.pattern.permute.xlu0 0
        %436 = vperm.xlu0 %435, %v292
        %v437 = vpop.permute.xlu0 %436
        %440 = vset.pattern.permute.xlu0 0
        %441 = vperm.xlu0 %440, %v293
        %v442 = vpop.permute.xlu0 %441
        %445 = vset.pattern.permute.xlu0 0
        %446 = vperm.xlu0 %445, %v294
        %v447 = vpop.permute.xlu0 %446
        %450 = vset.pattern.permute.xlu0 0
        %451 = vperm.xlu0 %450, %v295
        %v452 = vpop.permute.xlu0 %451
        %455 = vset.pattern.permute.xlu0 0
        %456 = vperm.xlu0 %455, %v296
        %v457 = vpop.permute.xlu0 %456
        %460 = vset.pattern.permute.xlu0 0
        %461 = vperm.xlu0 %460, %v297
        %v462 = vpop.permute.xlu0 %461
        %465 = vset.pattern.permute.xlu0 0
        %466 = vperm.xlu0 %465, %v298
        %v467 = vpop.permute.xlu0 %466
        %470 = vset.pattern.permute.xlu0 0
        %471 = vperm.xlu0 %470, %v299
        %v472 = vpop.permute.xlu0 %471
        %475 = vset.pattern.permute.xlu0 0
        %476 = vperm.xlu0 %475, %v300
        %v477 = vpop.permute.xlu0 %476
        %vm479 = vcmask 64512
        %v481 = vsel %vm479, %v329, 0
        %v484 = vsel %vm479, %v330, 0
        %v487 = vsel %vm479, %v331, 0
        %v490 = vsel %vm479, %v332, 0
        %v493 = vsel %vm479, %v333, 0
        %v496 = vsel %vm479, %v334, 0
        %v499 = vsel %vm479, %v335, 0
        %v502 = vsel %vm479, %v336, 0
        %v505 = vsel %vm479, %v337, 0
        %v508 = vsel %vm479, %v338, 0
        %v511 = vsel %vm479, %v339, 0
        %v514 = vsel %vm479, %v340, 0
        %v517 = vsel %vm479, %v341, 0
        %v520 = vsel %vm479, %v342, 0
        %v523 = vsel %vm479, %v343, 0
        %v526 = vsel %vm479, %v344, 0
        %v529 = vsel %vm479, %v345, 0
        %v532 = vsel %vm479, %v346, 0
        %v535 = vsel %vm479, %v347, 0
        %v538 = vsel %vm479, %v348, 0
        %v541 = vsel %vm479, %v349, 0
        %v544 = vsel %vm479, %v350, 0
        %v547 = vsel %vm479, %v351, 0
        %v550 = vsel %vm479, %v352, 0
        %v553 = vsel %vm479, %v353, 0
        %555 = vmatprep.subr.mxu0 0.0
        %556 = vmatpush1.msra.mxu0 %v328
        %557 = vmatprep.subr.mxu0 0.0
        %558 = vmatpush1.msra.mxu0 0.0
        %559 = vmatprep.subr.mxu0 0.0
        %560 = vmatpush1.msra.mxu0 0.0
        %561 = vmatprep.subr.mxu0 0.0
        %562 = vmatpush1.msra.mxu0 0.0
        %563 = vmatprep.subr.mxu0 0.0
        %564 = vmatpush1.msra.mxu0 0.0
        %565 = vmatprep.subr.mxu0 0.0
        %566 = vmatpush1.msra.mxu0 0.0
        %567 = vmatprep.subr.mxu0 0.0
        %568 = vmatpush1.msra.mxu0 0.0
        %569 = vmatprep.subr.mxu0 0.0
        %570 = vmatpush1.msra.mxu0 0.0
        %571 = vmatprep.subr.mxu0 0.0
        %572 = vmatpush1.msra.mxu0 0.0
        %573 = vmatprep.subr.mxu0 0.0
        %574 = vmatpush1.msra.mxu0 0.0
        %575 = vmatprep.subr.mxu0 0.0
        %576 = vmatpush1.msra.mxu0 0.0
        %577 = vmatprep.subr.mxu0 0.0
        %578 = vmatpush1.msra.mxu0 0.0
        %579 = vmatprep.subr.mxu0 0.0
        %580 = vmatpush1.msra.mxu0 0.0
        %581 = vmatprep.subr.mxu0 0.0
        %582 = vmatpush1.msra.mxu0 0.0
        %583 = vmatprep.subr.mxu0 0.0
        %584 = vmatpush1.msra.mxu0 0.0
        %585 = vmatprep.subr.mxu0 0.0
        %586 = vmatpush1.msra.mxu0 0.0
        %587 = vmatprep.subr.mxu0 0.0
        %588 = vmatpush1.msra.mxu0 0.0
        %589 = vmatprep.subr.mxu0 0.0
        %590 = vmatpush1.msra.mxu0 0.0
        %591 = vmatprep.subr.mxu0 0.0
        %592 = vmatpush1.msra.mxu0 0.0
        %593 = vmatprep.subr.mxu0 0.0
        %594 = vmatpush1.msra.mxu0 0.0
        %595 = vmatprep.subr.mxu0 0.0
        %596 = vmatpush1.msra.mxu0 0.0
        %597 = vmatprep.subr.mxu0 0.0
        %598 = vmatpush1.msra.mxu0 0.0
        %599 = vmatprep.subr.mxu0 0.0
        %600 = vmatpush1.msra.mxu0 0.0
        %601 = vmatprep.subr.mxu0 0.0
        %602 = vmatpush1.msra.mxu0 0.0
        %603 = vmatprep.subr.mxu0 0.0
        %604 = vmatpush1.msra.mxu0 0.0
        %605 = vmatprep.subr.mxu0 0.0
        %606 = vmatpush1.msra.mxu0 0.0
        %607 = vmatprep.subr.mxu0 0.0
        %608 = vmatpush1.msra.mxu0 0.0
        %609 = vmatprep.subr.mxu0 0.0
        %610 = vmatpush1.msra.mxu0 0.0
        %611 = vmatprep.subr.mxu0 0.0
        %612 = vmatpush1.msra.mxu0 0.0
        %613 = vmatprep.subr.mxu0 0.0
        %614 = vmatpush1.msra.mxu0 0.0
        %615 = vmatprep.subr.mxu0 0.0
        %616 = vmatpush1.msra.mxu0 0.0
        %617 = vmatprep.subr.mxu0 0.0
        %618 = vmatpush1.msra.mxu0 0.0
        %619 = vmatprep.mubr.f32.mxu0 0.0
        %620 = vmatmul.mubr.f32.gmra.mrb[0].mxu0 %v481
        %v621 = vpop.f32.mrb[0].mxu0
        %v622 = vadd.f32 %v357, %v621
        %v623 = vpop.f32.mrb[0].mxu0
        %624 = vmatprep.mubr.f32.mxu0 0.0
        %625 = vmatmul.mubr.f32.gmra.mrb[0].mxu0 %v484
        %v626 = vpop.f32.mrb[0].mxu0
        %v627 = vadd.f32 %v362, %v626
        %v628 = vpop.f32.mrb[0].mxu0
        %629 = vmatprep.mubr.f32.mxu0 0.0
        %630 = vmatmul.mubr.f32.gmra.mrb[0].mxu0 %v487
        %v631 = vpop.f32.mrb[0].mxu0
        %v632 = vadd.f32 %v367, %v631
        %v633 = vpop.f32.mrb[0].mxu0
        %634 = vmatprep.mubr.f32.mxu0 0.0
        %635 = vmatmul.mubr.f32.gmra.mrb[0].mxu0 %v490
        %v636 = vpop.f32.mrb[0].mxu0
        %v637 = vadd.f32 %v372, %v636
        %v638 = vpop.f32.mrb[0].mxu0
        %639 = vmatprep.mubr.f32.mxu0 0.0
        %640 = vmatmul.mubr.f32.gmra.mrb[0].mxu0 %v493
        %v641 = vpop.f32.mrb[0].mxu0
        %v642 = vadd.f32 %v377, %v641
        %v643 = vpop.f32.mrb[0].mxu0
        %644 = vmatprep.mubr.f32.mxu0 0.0
        %645 = vmatmul.mubr.f32.gmra.mrb[0].mxu0 %v496
        %v646 = vpop.f32.mrb[0].mxu0
        %v647 = vadd.f32 %v382, %v646
        %v648 = vpop.f32.mrb[0].mxu0
        %649 = vmatprep.mubr.f32.mxu0 0.0
        %650 = vmatmul.mubr.f32.gmra.mrb[0].mxu0 %v499
        %v651 = vpop.f32.mrb[0].mxu0
        %v652 = vadd.f32 %v387, %v651
        %v653 = vpop.f32.mrb[0].mxu0
        %654 = vmatprep.mubr.f32.mxu0 0.0
        %655 = vmatmul.mubr.f32.gmra.mrb[0].mxu0 %v502
        %v656 = vpop.f32.mrb[0].mxu0
        %v657 = vadd.f32 %v392, %v656
        %v658 = vpop.f32.mrb[0].mxu0
        %659 = vmatprep.mubr.f32.mxu0 0.0
        %660 = vmatmul.mubr.f32.gmra.mrb[0].mxu0 %v505
        %v661 = vpop.f32.mrb[0].mxu0
        %v662 = vadd.f32 %v397, %v661
        %v663 = vpop.f32.mrb[0].mxu0
        %664 = vmatprep.mubr.f32.mxu0 0.0
        %665 = vmatmul.mubr.f32.gmra.mrb[0].mxu0 %v508
        %v666 = vpop.f32.mrb[0].mxu0
        %v667 = vadd.f32 %v402, %v666
        %v668 = vpop.f32.mrb[0].mxu0
        %669 = vmatprep.mubr.f32.mxu0 0.0
        %670 = vmatmul.mubr.f32.gmra.mrb[0].mxu0 %v511
        %v671 = vpop.f32.mrb[0].mxu0
        %v672 = vadd.f32 %v407, %v671
        %v673 = vpop.f32.mrb[0].mxu0
        %674 = vmatprep.mubr.f32.mxu0 0.0
        %675 = vmatmul.mubr.f32.gmra.mrb[0].mxu0 %v514
        %v676 = vpop.f32.mrb[0].mxu0
        %v677 = vadd.f32 %v412, %v676
        %v678 = vpop.f32.mrb[0].mxu0
        %679 = vmatprep.mubr.f32.mxu0 0.0
        %680 = vmatmul.mubr.f32.gmra.mrb[0].mxu0 %v517
        %v681 = vpop.f32.mrb[0].mxu0
        %v682 = vadd.f32 %v417, %v681
        %v683 = vpop.f32.mrb[0].mxu0
        %684 = vmatprep.mubr.f32.mxu0 0.0
        %685 = vmatmul.mubr.f32.gmra.mrb[0].mxu0 %v520
        %v686 = vpop.f32.mrb[0].mxu0
        %v687 = vadd.f32 %v422, %v686
        %v688 = vpop.f32.mrb[0].mxu0
        %689 = vmatprep.mubr.f32.mxu0 0.0
        %690 = vmatmul.mubr.f32.gmra.mrb[0].mxu0 %v523
        %v691 = vpop.f32.mrb[0].mxu0
        %v692 = vadd.f32 %v427, %v691
        %v693 = vpop.f32.mrb[0].mxu0
        %694 = vmatprep.mubr.f32.mxu0 0.0
        %695 = vmatmul.mubr.f32.gmra.mrb[0].mxu0 %v526
        %v696 = vpop.f32.mrb[0].mxu0
        %v697 = vadd.f32 %v432, %v696
        %v698 = vpop.f32.mrb[0].mxu0
        %699 = vmatprep.mubr.f32.mxu0 0.0
        %700 = vmatmul.mubr.f32.gmra.mrb[0].mxu0 %v529
        %v701 = vpop.f32.mrb[0].mxu0
        %v702 = vadd.f32 %v437, %v701
        %v703 = vpop.f32.mrb[0].mxu0
        %704 = vmatprep.mubr.f32.mxu0 0.0
        %705 = vmatmul.mubr.f32.gmra.mrb[0].mxu0 %v532
        %v706 = vpop.f32.mrb[0].mxu0
        %v707 = vadd.f32 %v442, %v706
        %v708 = vpop.f32.mrb[0].mxu0
        %709 = vmatprep.mubr.f32.mxu0 0.0
        %710 = vmatmul.mubr.f32.gmra.mrb[0].mxu0 %v535
        %v711 = vpop.f32.mrb[0].mxu0
        %v712 = vadd.f32 %v447, %v711
        %v713 = vpop.f32.mrb[0].mxu0
        %714 = vmatprep.mubr.f32.mxu0 0.0
        %715 = vmatmul.mubr.f32.gmra.mrb[0].mxu0 %v538
        %v716 = vpop.f32.mrb[0].mxu0
        %v717 = vadd.f32 %v452, %v716
        %v718 = vpop.f32.mrb[0].mxu0
        %719 = vmatprep.mubr.f32.mxu0 0.0
        %720 = vmatmul.mubr.f32.gmra.mrb[0].mxu0 %v541
        %v721 = vpop.f32.mrb[0].mxu0
        %v722 = vadd.f32 %v457, %v721
        %v723 = vpop.f32.mrb[0].mxu0
        %724 = vmatprep.mubr.f32.mxu0 0.0
        %725 = vmatmul.mubr.f32.gmra.mrb[0].mxu0 %v544
        %v726 = vpop.f32.mrb[0].mxu0
        %v727 = vadd.f32 %v462, %v726
        %v728 = vpop.f32.mrb[0].mxu0
        %729 = vmatprep.mubr.f32.mxu0 0.0
        %730 = vmatmul.mubr.f32.gmra.mrb[0].mxu0 %v547
        %v731 = vpop.f32.mrb[0].mxu0
        %v732 = vadd.f32 %v467, %v731
        %v733 = vpop.f32.mrb[0].mxu0
        %734 = vmatprep.mubr.f32.mxu0 0.0
        %735 = vmatmul.mubr.f32.gmra.mrb[0].mxu0 %v550
        %v736 = vpop.f32.mrb[0].mxu0
        %v737 = vadd.f32 %v472, %v736
        %v738 = vpop.f32.mrb[0].mxu0
        %739 = vmatprep.mubr.f32.mxu0 0.0
        %740 = vmatmul.mubr.f32.gmra.mrb[0].mxu0 %v553
        %v741 = vpop.f32.mrb[0].mxu0
        %v742 = vadd.f32 %v477, %v741
        %v743 = vpop.f32.mrb[0].mxu0
        %744 = vdwg.mxu0
        %v745 = vmul.f32 %v622, 0.5
        %v746 = vmul.f32 %v627, 0.5
        %v747 = vmul.f32 %v632, 0.5
        %v748 = vmul.f32 %v637, 0.5
        %v749 = vmul.f32 %v642, 0.5
        %v750 = vmul.f32 %v647, 0.5
        %v751 = vmul.f32 %v652, 0.5
        %v752 = vmul.f32 %v657, 0.5
        %v753 = vmul.f32 %v662, 0.5
        %v754 = vmul.f32 %v667, 0.5
        %v755 = vmul.f32 %v672, 0.5
        %v756 = vmul.f32 %v677, 0.5
        %v757 = vmul.f32 %v682, 0.5
        %v758 = vmul.f32 %v687, 0.5
        %v759 = vmul.f32 %v692, 0.5
        %v760 = vmul.f32 %v697, 0.5
        %v761 = vmul.f32 %v702, 0.5
        %v762 = vmul.f32 %v707, 0.5
        %v763 = vmul.f32 %v712, 0.5
        %v764 = vmul.f32 %v717, 0.5
        %v765 = vmul.f32 %v722, 0.5
        %v766 = vmul.f32 %v727, 0.5
        %v767 = vmul.f32 %v732, 0.5
        %v768 = vmul.f32 %v737, 0.5
        %v769 = vmul.f32 %v742, 0.5
        %v770 = vmul.f32 %v622, 0.70710677
        %v771 = vmul.f32 %v627, 0.70710677
        %v772 = vmul.f32 %v632, 0.70710677
        %v773 = vmul.f32 %v637, 0.70710677
        %v774 = vmul.f32 %v642, 0.70710677
        %v775 = vmul.f32 %v647, 0.70710677
        %v776 = vmul.f32 %v652, 0.70710677
        %v777 = vmul.f32 %v657, 0.70710677
        %v778 = vmul.f32 %v662, 0.70710677
        %v779 = vmul.f32 %v667, 0.70710677
        %v780 = vmul.f32 %v672, 0.70710677
        %v781 = vmul.f32 %v677, 0.70710677
        %v782 = vmul.f32 %v682, 0.70710677
        %v783 = vmul.f32 %v687, 0.70710677
        %v784 = vmul.f32 %v692, 0.70710677
        %v785 = vmul.f32 %v697, 0.70710677
        %v786 = vmul.f32 %v702, 0.70710677
        %v787 = vmul.f32 %v707, 0.70710677
        %v788 = vmul.f32 %v712, 0.70710677
        %v789 = vmul.f32 %v717, 0.70710677
        %v790 = vmul.f32 %v722, 0.70710677
        %v791 = vmul.f32 %v727, 0.70710677
        %v792 = vmul.f32 %v732, 0.70710677
        %v793 = vmul.f32 %v737, 0.70710677
        %v794 = vmul.f32 %v742, 0.70710677
        %v795 = verf.f32.pop %v770
        %v796 = verf.f32.pop %v771
        %v797 = verf.f32.pop %v772
        %v798 = verf.f32.pop %v773
        %v799 = verf.f32.pop %v774
        %v800 = verf.f32.pop %v775
        %v801 = verf.f32.pop %v776
        %v802 = verf.f32.pop %v777
        %v803 = verf.f32.pop %v778
        %v804 = verf.f32.pop %v779
        %v805 = verf.f32.pop %v780
        %v806 = verf.f32.pop %v781
        %v807 = verf.f32.pop %v782
        %v808 = verf.f32.pop %v783
        %v809 = verf.f32.pop %v784
        %v810 = verf.f32.pop %v785
        %v811 = verf.f32.pop %v786
        %v812 = verf.f32.pop %v787
        %v813 = verf.f32.pop %v788
        %v814 = verf.f32.pop %v789
        %v815 = verf.f32.pop %v790
        %v816 = verf.f32.pop %v791
        %v817 = verf.f32.pop %v792
        %v818 = verf.f32.pop %v793
        %v819 = verf.f32.pop %v794
        %v820 = vadd.f32 %v795, 1.0
        %v821 = vadd.f32 %v796, 1.0
        %v822 = vadd.f32 %v797, 1.0
        %v823 = vadd.f32 %v798, 1.0
        %v824 = vadd.f32 %v799, 1.0
        %v825 = vadd.f32 %v800, 1.0
        %v826 = vadd.f32 %v801, 1.0
        %v827 = vadd.f32 %v802, 1.0
        %v828 = vadd.f32 %v803, 1.0
        %v829 = vadd.f32 %v804, 1.0
        %v830 = vadd.f32 %v805, 1.0
        %v831 = vadd.f32 %v806, 1.0
        %v832 = vadd.f32 %v807, 1.0
        %v833 = vadd.f32 %v808, 1.0
        %v834 = vadd.f32 %v809, 1.0
        %v835 = vadd.f32 %v810, 1.0
        %v836 = vadd.f32 %v811, 1.0
        %v837 = vadd.f32 %v812, 1.0
        %v838 = vadd.f32 %v813, 1.0
        %v839 = vadd.f32 %v814, 1.0
        %v840 = vadd.f32 %v815, 1.0
        %v841 = vadd.f32 %v816, 1.0
        %v842 = vadd.f32 %v817, 1.0
        %v843 = vadd.f32 %v818, 1.0
        %v844 = vadd.f32 %v819, 1.0
        %v845 = vmul.f32 %v745, %v820
        %v846 = vmul.f32 %v746, %v821
        %v847 = vmul.f32 %v747, %v822
        %v848 = vmul.f32 %v748, %v823
        %v849 = vmul.f32 %v749, %v824
        %v850 = vmul.f32 %v750, %v825
        %v851 = vmul.f32 %v751, %v826
        %v852 = vmul.f32 %v752, %v827
        %v853 = vmul.f32 %v753, %v828
        %v854 = vmul.f32 %v754, %v829
        %v855 = vmul.f32 %v755, %v830
        %v856 = vmul.f32 %v756, %v831
        %v857 = vmul.f32 %v757, %v832
        %v858 = vmul.f32 %v758, %v833
        %v859 = vmul.f32 %v759, %v834
        %v860 = vmul.f32 %v760, %v835
        %v861 = vmul.f32 %v761, %v836
        %v862 = vmul.f32 %v762, %v837
        %v863 = vmul.f32 %v763, %v838
        %v864 = vmul.f32 %v764, %v839
        %v865 = vmul.f32 %v765, %v840
        %v866 = vmul.f32 %v766, %v841
        %v867 = vmul.f32 %v767, %v842
        %v868 = vmul.f32 %v768, %v843
        %v869 = vmul.f32 %v769, %v844
        %v870 = vld [vmem:[%s5] sm:$0xff]
        %v871 = vld [vmem:[%s5 + $0x8] sm:$0xff]
        %873 = vset.pattern.permute.xlu0 0
        %874 = vperm.xlu0 %873, %v301
        %v875 = vpop.permute.xlu0 %874
        %vm877 = vcmask 588800
        %v879 = vsel %vm877, %v871, 0
        %881 = vmatprep.subr.mxu0 0.0
        %882 = vmatpush1.msra.mxu0 %v845
        %883 = vmatprep.subr.mxu0 0.0
        %884 = vmatpush1.msra.mxu0 %v846
        %885 = vmatprep.subr.mxu0 0.0
        %886 = vmatpush1.msra.mxu0 %v847
        %887 = vmatprep.subr.mxu0 0.0
        %888 = vmatpush1.msra.mxu0 %v848
        %889 = vmatprep.subr.mxu0 0.0
        %890 = vmatpush1.msra.mxu0 %v849
        %891 = vmatprep.subr.mxu0 0.0
        %892 = vmatpush1.msra.mxu0 %v850
        %893 = vmatprep.subr.mxu0 0.0
        %894 = vmatpush1.msra.mxu0 %v851
        %895 = vmatprep.subr.mxu0 0.0
        %896 = vmatpush1.msra.mxu0 %v852
        %897 = vmatprep.subr.mxu0 0.0
        %898 = vmatpush1.msra.mxu0 %v853
        %899 = vmatprep.subr.mxu0 0.0
        %900 = vmatpush1.msra.mxu0 %v854
        %901 = vmatprep.subr.mxu0 0.0
        %902 = vmatpush1.msra.mxu0 %v855
        %903 = vmatprep.subr.mxu0 0.0
        %904 = vmatpush1.msra.mxu0 %v856
        %905 = vmatprep.subr.mxu0 0.0
        %906 = vmatpush1.msra.mxu0 %v857
        %907 = vmatprep.subr.mxu0 0.0
        %908 = vmatpush1.msra.mxu0 %v858
        %909 = vmatprep.subr.mxu0 0.0
        %910 = vmatpush1.msra.mxu0 %v859
        %911 = vmatprep.subr.mxu0 0.0
        %912 = vmatpush1.msra.mxu0 %v860
        %913 = vmatprep.subr.mxu0 0.0
        %914 = vmatpush1.msra.mxu0 %v861
        %915 = vmatprep.subr.mxu0 0.0
        %916 = vmatpush1.msra.mxu0 %v862
        %917 = vmatprep.subr.mxu0 0.0
        %918 = vmatpush1.msra.mxu0 %v863
        %919 = vmatprep.subr.mxu0 0.0
        %920 = vmatpush1.msra.mxu0 %v864
        %921 = vmatprep.subr.mxu0 0.0
        %922 = vmatpush1.msra.mxu0 %v865
        %923 = vmatprep.subr.mxu0 0.0
        %924 = vmatpush1.msra.mxu0 %v866
        %925 = vmatprep.subr.mxu0 0.0
        %926 = vmatpush1.msra.mxu0 %v867
        %927 = vmatprep.subr.mxu0 0.0
        %928 = vmatpush1.msra.mxu0 %v868
        %929 = vmatprep.subr.mxu0 0.0
        %930 = vmatpush1.msra.mxu0 %v869
        %931 = vmatprep.subr.mxu0 0.0
        %932 = vmatpush1.msra.mxu0 0.0
        %933 = vmatprep.subr.mxu0 0.0
        %934 = vmatpush1.msra.mxu0 0.0
        %935 = vmatprep.subr.mxu0 0.0
        %936 = vmatpush1.msra.mxu0 0.0
        %937 = vmatprep.subr.mxu0 0.0
        %938 = vmatpush1.msra.mxu0 0.0
        %939 = vmatprep.subr.mxu0 0.0
        %940 = vmatpush1.msra.mxu0 0.0
        %941 = vmatprep.subr.mxu0 0.0
        %942 = vmatpush1.msra.mxu0 0.0
        %943 = vmatprep.subr.mxu0 0.0
        %944 = vmatpush1.msra.mxu0 0.0
        %945 = vmatprep.mubr.f32.mxu0 %v879
        %946 = vmatmul.mubr.f32.gmra.mrb[0].mxu0 %v870
        %v947 = vpop.f32.mrb[0].mxu0
        %v948 = vadd.f32 %v875, %v947
        %v949 = vpop.f32.mrb[0].mxu0
        %950 = vdwg.mxu0
        %v951 = vadd.f32 %v948, %v302
        %952 = vst [vmem:[%s269] sm:$0xff] %v951
        %s953 = sand.u32 %s181, 1
        %s954 = scalar_lea.sflag [#allocation3], %s953
        %s955 = sand.u32 %s181, 1
        %s956 = smul.addr %s955, 8
        %s957 = scalar_lea.vmem [#allocation2], %s956
        // Predicated region
        $region49: #{tpu_custom_call.1} parent=47 // pred_check
          %p958 = pneg %p191
        $region50: #{tpu_custom_call.1} parent=47 // pred_check_branch
          %960 = sbr.rel (%p958) target = $region52
        $region51: #{tpu_custom_call.1} parent=47 // pred_region
          %s962 = ssub.s32 128, 128
          %963 = vsyncadd %s954, %s962
          %s964 = smul.addr %s21, 128
          %s965 = scalar_lea.hbm %s7, %s964
          %s967 = sshll.u32 %s957, 4
          %s968 = int_to_ptr.vmem [resolvable:$true] %s967
          %970 = dma.vmem_to_hbm [thread:$0]  %s968, 128, %s965, %s954
        $region52: #{tpu_custom_call.1} parent=47 // pred_fallthru
          _
      $region48: #{tpu_custom_call.1} parent=5 // pred_fallthru
        _
      %p971 = scmp.le.s32.totalorder 2, %s16
      // Predicated region
      $region53: #{tpu_custom_call.1} parent=5 // pred_check
        %p972 = pneg %p971
      $region54: #{tpu_custom_call.1} parent=5 // pred_check_branch
        %974 = sbr.rel (%p972) target = $region56
      $region55: #{tpu_custom_call.1} parent=5 // pred_region
        %s975 = ssub.s32 %s16, 2
        // Predicated region
        $region57: #{tpu_custom_call.1} parent=55 // pred_check
          %p976 = pneg %p197
        $region58: #{tpu_custom_call.1} parent=55 // pred_check_branch
          %978 = sbr.rel (%p976) target = $region60
        $region59: #{tpu_custom_call.1} parent=55 // pred_region
          %s979 = sand.u32 %s182, 1
          %s980 = scalar_lea.sflag [#allocation3], %s979
          %s981 = sand.u32 %s182, 1
          %s982 = smul.addr %s981, 8
          %s983 = scalar_lea.vmem [#allocation2], %s982
          %984 = dma.done %s980, 128
        $region60: #{tpu_custom_call.1} parent=55 // pred_fallthru
          _
      $region56: #{tpu_custom_call.1} parent=5 // pred_fallthru
        _
    $region6: #{tpu_custom_call.1} parent=1 // loop_footer
      %s20 = sadd.s32 1, %s16
    $region7: #{tpu_custom_call.1} parent=1 // loop_footer_branch
      %15 = sbr.rel target = $region3
    $region8: #{tpu_custom_call.1} parent=1 // loop_exit
      _
    %985 = vsyncpa [#allocation3], 1
    %s986 = scalar_lea.sflag [#allocation3], 1
    %987 = vsyncpa %s986, 1

</llo_original>
